<compile_context>
chip_gen: v7x
topology: tpu7x:2x2x1
jax: 0.10.0
libtpu: 0.0.40
codegen_flags: <defaults>
</compile_context>

<pallas_src>
import numpy as np
import jax
import jax.numpy as jnp
from jax.experimental import pallas as pl
from jax.experimental.pallas import tpu as pltpu


def _round_up(x, m):
    return (x + m - 1) // m * m


def _host_freqs(n_freqs, logscale):
    """Frequency constants, computed host-side with numpy (no tracing)."""
    if logscale:
        return np.power(2.0, np.arange(n_freqs, dtype=np.float64))
    return np.linspace(1.0, 2.0 ** (n_freqs - 1), n_freqs)


def _pos_embed_kernel(coef_ref, kind_ref, x_ref, o_ref):
    """coef/kind: (1, out_c) per-column freq / selector; x: (TB, C)."""
    C = x_ref.shape[1]
    out_c = o_ref.shape[1]
    reps = out_c // C                                     # 2*N_freqs + 1

    x = x_ref[...].astype(jnp.float32)                    # (TB, C)
    # Replicate x across lanes once -> (TB, out_c); everything downstream is
    # full-width vector work with a single dense store.
    xw = jnp.concatenate([x] * reps, axis=1)              # (TB, out_c)

    coef = coef_ref[...]                                  # (1, out_c) f32
    kind = kind_ref[...]                                  # (1, out_c) i32

    fx = xw * coef                                        # per-column freq*x
    s = jnp.sin(fx)                                       # one wide EUP pass
    c = jnp.cos(fx)                                       # one wide EUP pass

    is_x = jnp.broadcast_to(kind == 0, fx.shape)
    is_sin = jnp.broadcast_to(kind == 1, fx.shape)
    out = jnp.where(is_x, xw, jnp.where(is_sin, s, c))
    o_ref[...] = out.astype(o_ref.dtype)


def pos_embedding(x, n_freqs=10, logscale=True, *, block_rows=2048,
                  out_dtype=None):
    """x: (B, C) -> (B, C*(2*n_freqs+1)), matching the PyTorch PosEmbedding."""
    B, C = x.shape
    out_dtype = x.dtype if out_dtype is None else out_dtype
    out_c = C * (2 * n_freqs + 1)

    # Per-output-column coefficient and kind rows (host-side numpy):
    #   columns [0, C)                : identity (coef=1, kind=0)
    #   columns [(1+2g)C, (2+2g)C)    : sin(f_g * x)  (kind=1)
    #   columns [(2+2g)C, (3+2g)C)    : cos(f_g * x)  (kind=2)
    freqs = _host_freqs(n_freqs, logscale).astype(np.float32)
    coef = np.ones((1, out_c), dtype=np.float32)
    kind = np.zeros((1, out_c), dtype=np.int32)
    for g in range(n_freqs):
        lo = (1 + 2 * g) * C
        coef[0, lo:lo + C] = freqs[g]
        kind[0, lo:lo + C] = 1
        coef[0, lo + C:lo + 2 * C] = freqs[g]
        kind[0, lo + C:lo + 2 * C] = 2

    # Batch tile: multiple of 8 sublanes; pad B so the grid divides evenly.
    tb = int(min(block_rows, _round_up(max(B, 1), 8)))
    tb = _round_up(tb, 8)
    b_pad = _round_up(B, tb)
    xp = x if b_pad == B else jnp.pad(x, ((0, b_pad - B), (0, 0)))

    out = pl.pallas_call(
        _pos_embed_kernel,
        out_shape=jax.ShapeDtypeStruct((b_pad, out_c), out_dtype),
        grid=(b_pad // tb,),
        in_specs=[
            pl.BlockSpec((1, out_c), lambda i: (0, 0)),   # coef row
            pl.BlockSpec((1, out_c), lambda i: (0, 0)),   # kind row
            pl.BlockSpec((tb, C), lambda i: (i, 0)),      # x tile
        ],
        out_specs=pl.BlockSpec((tb, out_c), lambda i: (i, 0)),
        compiler_params=pltpu.CompilerParams(
            dimension_semantics=("parallel",)),
    )(jnp.asarray(coef), jnp.asarray(kind), xp)
    return out if b_pad == B else out[:B]


def pos_embedding_ref(x, n_freqs=10, logscale=True):
    """Pure-JAX reference matching the PyTorch forward loop."""
    freqs = _host_freqs(n_freqs, logscale)
    out = x
    for f in freqs:
        f = jnp.float32(f)
        out = jnp.concatenate([out, jnp.sin(f * x)], axis=1)
        out = jnp.concatenate([out, jnp.cos(f * x)], axis=1)
    return out


if __name__ == "__main__":
    key = jax.random.PRNGKey(0)
    N_FREQS = 10
    B, C = 200, 3  # NeRF-style input: (Batch, 3) -> (Batch, 63)
    x = jax.random.uniform(key, (B, C), dtype=jnp.float32,
                           minval=-1.0, maxval=1.0)

    # Small block_rows so the test exercises a multi-step, padded, parallel grid.
    out = pos_embedding(x, n_freqs=N_FREQS, logscale=True, block_rows=64)
    out = jax.block_until_ready(out)

    ref = pos_embedding_ref(x, n_freqs=N_FREQS, logscale=True)
    assert out.shape == (B, C * (2 * N_FREQS + 1)), out.shape
    assert jnp.allclose(out, ref, atol=1e-5, rtol=1e-5), "mismatch vs reference"

    print("KERNEL_OK")
</pallas_src>

<mosaic_0001>
module attributes {stable_mosaic.version = 11 : i64} {
  func.func @_pos_embed_kernel(%arg0: i32, %arg1: memref<1x63xf32, #tpu.memory_space<vmem>>, %arg2: memref<1x63xi32, #tpu.memory_space<vmem>>, %arg3: memref<64x3xf32, #tpu.memory_space<vmem>>, %arg4: memref<64x63xf32, #tpu.memory_space<vmem>>) attributes {dimension_semantics = [#tpu.dimension_semantics<parallel>], iteration_bounds = array<i64: 4>, scalar_prefetch = 0 : i64, scratch_operands = 0 : i64, tpu.core_type = #tpu.core_type<tc>, window_params = [{pipeline_mode = #tpu.pipeline_mode<synchronous>, transform_indices = @transform_0, window_bounds = array<i64: 1, 63>}, {pipeline_mode = #tpu.pipeline_mode<synchronous>, transform_indices = @transform_1, window_bounds = array<i64: 1, 63>}, {transform_indices = @transform_2, window_bounds = array<i64: 64, 3>}, {transform_indices = @transform_3, window_bounds = array<i64: 64, 63>}]} {
    %c0 = arith.constant 0 : index
    %c0_0 = arith.constant 0 : index
    %0 = vector.load %arg3[%c0, %c0_0] : memref<64x3xf32, #tpu.memory_space<vmem>>, vector<64x3xf32>
    %1 = tpu.concatenate %0, %0, %0, %0, %0, %0, %0, %0, %0, %0, %0, %0, %0, %0, %0, %0 in 1 : vector<64x3xf32>, vector<64x3xf32>, vector<64x3xf32>, vector<64x3xf32>, vector<64x3xf32>, vector<64x3xf32>, vector<64x3xf32>, vector<64x3xf32>, vector<64x3xf32>, vector<64x3xf32>, vector<64x3xf32>, vector<64x3xf32>, vector<64x3xf32>, vector<64x3xf32>, vector<64x3xf32>, vector<64x3xf32> -> vector<64x48xf32>
    %2 = tpu.concatenate %0, %0, %0, %0, %0 in 1 : vector<64x3xf32>, vector<64x3xf32>, vector<64x3xf32>, vector<64x3xf32>, vector<64x3xf32> -> vector<64x15xf32>
    %3 = tpu.concatenate %1, %2 in 1 : vector<64x48xf32>, vector<64x15xf32> -> vector<64x63xf32>
    %c0_1 = arith.constant 0 : index
    %c0_2 = arith.constant 0 : index
    %4 = vector.load %arg1[%c0_1, %c0_2] : memref<1x63xf32, #tpu.memory_space<vmem>>, vector<1x63xf32>
    %c0_3 = arith.constant 0 : index
    %c0_4 = arith.constant 0 : index
    %5 = vector.load %arg2[%c0_3, %c0_4] : memref<1x63xi32, #tpu.memory_space<vmem>>, vector<1x63xi32>
    %6 = vector.broadcast %4 : vector<1x63xf32> to vector<64x63xf32>
    %7 = arith.mulf %3, %6 : vector<64x63xf32>
    %8 = math.sin %7 : vector<64x63xf32>
    %9 = math.cos %7 : vector<64x63xf32>
    %c0_i32 = arith.constant 0 : i32
    %10 = vector.broadcast %c0_i32 : i32 to vector<1x63xi32>
    %11 = arith.cmpi eq, %5, %10 : vector<1x63xi32>
    %12 = vector.shape_cast %11 : vector<1x63xi1> to vector<1x63xi1>
    %13 = vector.broadcast %12 : vector<1x63xi1> to vector<64x63xi1>
    %c1_i32 = arith.constant 1 : i32
    %14 = vector.broadcast %c1_i32 : i32 to vector<1x63xi32>
    %15 = arith.cmpi eq, %5, %14 : vector<1x63xi32>
    %16 = vector.shape_cast %15 : vector<1x63xi1> to vector<1x63xi1>
    %17 = vector.broadcast %16 : vector<1x63xi1> to vector<64x63xi1>
    %18 = arith.select %17, %8, %9 : vector<64x63xi1>, vector<64x63xf32>
    %19 = arith.select %13, %3, %18 : vector<64x63xi1>, vector<64x63xf32>
    %c0_5 = arith.constant 0 : index
    %c0_6 = arith.constant 0 : index
    %20 = vector.load %arg4[%c0_5, %c0_6] : memref<64x63xf32, #tpu.memory_space<vmem>>, vector<64x63xf32>
    tpu.vector_store %arg4[%c0_5, %c0_6], %19 {strides = array<i32>} : memref<64x63xf32, #tpu.memory_space<vmem>>, vector<64x63xf32>,
    return
  }
  func.func @transform_0(%arg0: i32) -> (i32, i32) {
    %c0_i32 = arith.constant 0 : i32
    %c0_i32_0 = arith.constant 0 : i32
    %c0_i32_1 = arith.constant 0 : i32
    return %c0_i32, %c0_i32_0 : i32, i32
  }
  func.func @transform_1(%arg0: i32) -> (i32, i32) {
    %c0_i32 = arith.constant 0 : i32
    %c0_i32_0 = arith.constant 0 : i32
    %c0_i32_1 = arith.constant 0 : i32
    return %c0_i32, %c0_i32_0 : i32, i32
  }
  func.func @transform_2(%arg0: i32) -> (i32, i32) {
    %c0_i32 = arith.constant 0 : i32
    %c0_i32_0 = arith.constant 0 : i32
    return %arg0, %c0_i32 : i32, i32
  }
  func.func @transform_3(%arg0: i32) -> (i32, i32) {
    %c0_i32 = arith.constant 0 : i32
    %c0_i32_0 = arith.constant 0 : i32
    return %arg0, %c0_i32 : i32, i32
  }
}

</mosaic_0001>

<llo_original>
// kernel: tpu_custom_call.1
$region0: #{tpu_custom_call.1}
  #allocation0 [shape = 'u32[]', space=smem, size = 0x4, offset = 0x4, fixed_abs, tag = 'smem constant byte address 0x4 - core index']
  #allocation1 [shape = 'u32[144,128]{1,0:T(1,128)}', space=vmem, size = 0x12000, scoped, tag = 'internal scratch']
  %s0 = inlined_call_operand.vmem [shape: f32[1,63], index: 0, kind: input, shape index: {}]
  %s1 = inlined_call_operand.vmem [shape: s32[1,63], index: 1, kind: input, shape index: {}]
  %s2 = inlined_call_operand.vmem [shape: f32[256,3], index: 2, kind: input, shape index: {}]
  %s3 = inlined_call_operand.vmem [shape: f32[256,63], index: 3, kind: output, shape index: {}]
  %s4 = sld [smem:[#allocation0]]
  $region45: #{tpu_custom_call.1} parent=0
    _
  %s6 = ssub.s32 1, %s4
  %s7 = scalar_select 0, %s6, %s4
  loop: start=0, step=1, limit=6
  $region2: #{tpu_custom_call.1} parent=0 // loop_pre_header
    _
  $region3: #{tpu_custom_call.1} parent=0 // loop_header
    %s9 = sphi 0, %s13
    %p10 = scmp.ge.s32.totalorder %s9, 6
    %s17 = sphi 0, %s17
    %s19 = sphi 0, %s17
    %s20 = sphi 0, %s19
    %s34 = sphi 0, %s20
    %s38 = sphi 0, %s38
    %s40 = sphi 0, %s38
    %s41 = sphi 0, %s40
    %s55 = sphi 0, %s41
    %s61 = sphi 0, %s63
    %s64 = sphi 0, %s61
    %s65 = sphi 0, %s64
    %s81 = sphi 0, %s65
    %s87 = sphi 0, %s89
    %s90 = sphi 0, %s87
    %s91 = sphi 0, %s90
    %s107 = sphi 0, %s91
  $region4: #{tpu_custom_call.1} parent=0 // loop_header_branch
    %12 = sbr.rel (%p10) target = $region8
  $region5: #{tpu_custom_call.1} parent=0 // loop_body
    %s14 = ssub.s32 %s9, 1
    %s15 = ssub.s32 %s9, 2
    %s16 = sadd.s32 %s9, 1
    %s18 = sadd.s32 %s17, 1
    %p21 = scmp.eq.s32.totalorder %s9, 3
    %p22 = scmp.ne.s32.totalorder %s17, %s19
    %p23 = scmp.eq.s32.totalorder %s9, 0
    %p24 = por %p22, %p23
    %p25 = scmp.ne.s32.totalorder %s17, %s19
    %p26 = scmp.eq.s32.totalorder %s14, 3
    %p27 = por %p25, %p26
    %p28 = scmp.ne.s32.totalorder %s19, %s20
    %p29 = scmp.eq.s32.totalorder %s14, 0
    %p30 = por %p28, %p29
    %p31 = scmp.ne.s32.totalorder %s19, %s20
    %p32 = scmp.eq.s32.totalorder %s15, 3
    %p33 = por %p31, %p32
    %p35 = scmp.ne.s32.totalorder %s20, %s34
    %p36 = scmp.eq.s32.totalorder %s15, 0
    %p37 = por %p35, %p36
    %s39 = sadd.s32 %s38, 1
    %p42 = scmp.eq.s32.totalorder %s9, 3
    %p43 = scmp.ne.s32.totalorder %s38, %s40
    %p44 = scmp.eq.s32.totalorder %s9, 0
    %p45 = por %p43, %p44
    %p46 = scmp.ne.s32.totalorder %s38, %s40
    %p47 = scmp.eq.s32.totalorder %s14, 3
    %p48 = por %p46, %p47
    %p49 = scmp.ne.s32.totalorder %s40, %s41
    %p50 = scmp.eq.s32.totalorder %s14, 0
    %p51 = por %p49, %p50
    %p52 = scmp.ne.s32.totalorder %s40, %s41
    %p53 = scmp.eq.s32.totalorder %s15, 3
    %p54 = por %p52, %p53
    %p56 = scmp.ne.s32.totalorder %s41, %s55
    %p57 = scmp.eq.s32.totalorder %s15, 0
    %p58 = por %p56, %p57
    %s59 = ssub.s32 %s9, %s16
    %p60 = scmp.eq.s32.totalorder %s59, 0
    %s62 = sadd.s32 %s61, 1
    %s63 = scalar_select %p60, %s61, %s62
    %p66 = pneg %p60
    %p67 = scmp.eq.s32.totalorder %s9, 3
    %p68 = por %p66, %p67
    %p69 = scmp.ne.s32.totalorder %s61, %s64
    %p70 = scmp.eq.s32.totalorder %s9, 0
    %p71 = por %p69, %p70
    %p72 = scmp.ne.s32.totalorder %s61, %s64
    %p73 = scmp.eq.s32.totalorder %s14, 3
    %p74 = por %p72, %p73
    %p75 = scmp.ne.s32.totalorder %s64, %s65
    %p76 = scmp.eq.s32.totalorder %s14, 0
    %p77 = por %p75, %p76
    %p78 = scmp.ne.s32.totalorder %s64, %s65
    %p79 = scmp.eq.s32.totalorder %s15, 3
    %p80 = por %p78, %p79
    %p82 = scmp.ne.s32.totalorder %s65, %s81
    %p83 = scmp.eq.s32.totalorder %s15, 0
    %p84 = por %p82, %p83
    %s85 = ssub.s32 %s9, %s16
    %p86 = scmp.eq.s32.totalorder %s85, 0
    %s88 = sadd.s32 %s87, 1
    %s89 = scalar_select %p86, %s87, %s88
    %p92 = pneg %p86
    %p93 = scmp.eq.s32.totalorder %s9, 3
    %p94 = por %p92, %p93
    %p95 = scmp.ne.s32.totalorder %s87, %s90
    %p96 = scmp.eq.s32.totalorder %s9, 0
    %p97 = por %p95, %p96
    %p98 = scmp.ne.s32.totalorder %s87, %s90
    %p99 = scmp.eq.s32.totalorder %s14, 3
    %p100 = por %p98, %p99
    %p101 = scmp.ne.s32.totalorder %s90, %s91
    %p102 = scmp.eq.s32.totalorder %s14, 0
    %p103 = por %p101, %p102
    %p104 = scmp.ne.s32.totalorder %s90, %s91
    %p105 = scmp.eq.s32.totalorder %s15, 3
    %p106 = por %p104, %p105
    %p108 = scmp.ne.s32.totalorder %s91, %s107
    %p109 = scmp.eq.s32.totalorder %s15, 0
    %p110 = por %p108, %p109
    %p111 = scmp.le.s32.totalorder 1, %s9
    %p112 = scmp.lt.s32.totalorder %s9, 5
    %p113 = pnand %p111, %p112
    %p114 = pneg %p113
    // Predicated region
    $region9: #{tpu_custom_call.1} parent=5 // pred_check
      _
    $region10: #{tpu_custom_call.1} parent=5 // pred_check_branch
      %116 = sbr.rel (%p113) target = $region12
    $region11: #{tpu_custom_call.1} parent=5 // pred_region
      %s117 = ssub.s32 %s9, 1
      // Predicated region
      $region13: #{tpu_custom_call.1} parent=11 // pred_check
        %p118 = pneg %p30
      $region14: #{tpu_custom_call.1} parent=11 // pred_check_branch
        %120 = sbr.rel (%p118) target = $region16
      $region15: #{tpu_custom_call.1} parent=11 // pred_region
        _
      $region16: #{tpu_custom_call.1} parent=11 // pred_fallthru
        _
      // Predicated region
      $region17: #{tpu_custom_call.1} parent=11 // pred_check
        %p121 = pneg %p51
      $region18: #{tpu_custom_call.1} parent=11 // pred_check_branch
        %123 = sbr.rel (%p121) target = $region20
      $region19: #{tpu_custom_call.1} parent=11 // pred_region
        _
      $region20: #{tpu_custom_call.1} parent=11 // pred_fallthru
        _
    $region12: #{tpu_custom_call.1} parent=5 // pred_fallthru
      _
    %p124 = scmp.lt.s32.totalorder %s9, 4
    // Predicated region
    $region21: #{tpu_custom_call.1} parent=5 // pred_check
      %p125 = pneg %p124
    $region22: #{tpu_custom_call.1} parent=5 // pred_check_branch
      %127 = sbr.rel (%p125) target = $region24
    $region23: #{tpu_custom_call.1} parent=5 // pred_region
      // Predicated region
      $region25: #{tpu_custom_call.1} parent=23 // pred_check
        %p128 = pneg %p71
      $region26: #{tpu_custom_call.1} parent=23 // pred_check_branch
        %130 = sbr.rel (%p128) target = $region28
      $region27: #{tpu_custom_call.1} parent=23 // pred_region
        %s131 = smul.u32 8, %s9
        %p132 = scmp.lt.s32.totalorder %s131, 31
        %s133 = scalar_select %p132, %s131, 31
        %s134 = smul.addr %s133, 8
        %s135 = scalar_lea.vmem %s2, %s134
        %s136 = smul.u32 8, %s9
      $region28: #{tpu_custom_call.1} parent=23 // pred_fallthru
        _
    $region24: #{tpu_custom_call.1} parent=5 // pred_fallthru
      _
    %p137 = scmp.le.s32.totalorder 1, %s9
    %p138 = scmp.lt.s32.totalorder %s9, 5
    %p139 = pnand %p137, %p138
    %p140 = pneg %p139
    // Predicated region
    $region29: #{tpu_custom_call.1} parent=5 // pred_check
      _
    $region30: #{tpu_custom_call.1} parent=5 // pred_check_branch
      %142 = sbr.rel (%p139) target = $region32
    $region31: #{tpu_custom_call.1} parent=5 // pred_region
      %s143 = ssub.s32 %s9, 1
      %p144 = pneg %p30
      %p145 = pneg %p27
      %p146 = pneg %p51
      %p147 = pneg %p48
      %s148 = smul.u32 8, %s14
      %p149 = scmp.lt.s32.totalorder %s148, 31
      %s150 = scalar_select %p149, %s148, 31
      %s151 = smul.addr %s150, 8
      %s152 = scalar_lea.vmem %s2, %s151
      %p153 = pneg %p77
      %p154 = pneg %p74
      %p155 = pneg %p103
      %p156 = pneg %p100
      %s157 = smul.u32 8, %s14
      %p158 = scmp.lt.s32.totalorder %s157, 31
      %s159 = scalar_select %p158, %s157, 31
      %s160 = smul.addr %s159, 8
      %s161 = scalar_lea.vmem %s3, %s160
      %s162 = smul.u32 8, %s14
      %p163 = scmp.lt.s32.totalorder %s162, 31
      %s164 = scalar_select %p163, %s162, 31
      %s165 = smul.addr %s164, 8
      %s166 = scalar_lea.vmem %s2, %s165
      %s167 = smul.u32 8, %s14
      %s168 = smul.u32 8, %s14
      %p169 = scmp.lt.s32.totalorder %s168, 31
      %s170 = scalar_select %p169, %s168, 31
      %s171 = smul.addr %s170, 8
      %s172 = scalar_lea.vmem %s3, %s171
      %s173 = smul.u32 8, %s14
      %v174 = vld [vmem:[%s166] sm:$0xff]
      %v175 = vld [vmem:[%s166 + $0x8] sm:$0xff]
      %v176 = vld [vmem:[%s166 + $0x10] sm:$0xff]
      %v177 = vld [vmem:[%s166 + $0x18] sm:$0xff]
      %v178 = vld [vmem:[%s166 + $0x20] sm:$0xff]
      %v179 = vld [vmem:[%s166 + $0x28] sm:$0xff]
      %v180 = vld [vmem:[%s166 + $0x30] sm:$0xff]
      %v181 = vld [vmem:[%s166 + $0x38] sm:$0xff]
      %190 = vrot.lane.b32.xlu0 %v174, 3
      %v191 = vpop.permute.xlu0 %190
      %192 = vrot.lane.b32.xlu0 %v175, 3
      %v193 = vpop.permute.xlu0 %192
      %194 = vrot.lane.b32.xlu0 %v176, 3
      %v195 = vpop.permute.xlu0 %194
      %196 = vrot.lane.b32.xlu0 %v177, 3
      %v197 = vpop.permute.xlu0 %196
      %198 = vrot.lane.b32.xlu0 %v178, 3
      %v199 = vpop.permute.xlu0 %198
      %200 = vrot.lane.b32.xlu0 %v179, 3
      %v201 = vpop.permute.xlu0 %200
      %202 = vrot.lane.b32.xlu0 %v180, 3
      %v203 = vpop.permute.xlu0 %202
      %204 = vrot.lane.b32.xlu0 %v181, 3
      %v205 = vpop.permute.xlu0 %204
      %214 = vrot.lane.b32.xlu0 %v174, 6
      %v215 = vpop.permute.xlu0 %214
      %216 = vrot.lane.b32.xlu0 %v175, 6
      %v217 = vpop.permute.xlu0 %216
      %218 = vrot.lane.b32.xlu0 %v176, 6
      %v219 = vpop.permute.xlu0 %218
      %220 = vrot.lane.b32.xlu0 %v177, 6
      %v221 = vpop.permute.xlu0 %220
      %222 = vrot.lane.b32.xlu0 %v178, 6
      %v223 = vpop.permute.xlu0 %222
      %224 = vrot.lane.b32.xlu0 %v179, 6
      %v225 = vpop.permute.xlu0 %224
      %226 = vrot.lane.b32.xlu0 %v180, 6
      %v227 = vpop.permute.xlu0 %226
      %228 = vrot.lane.b32.xlu0 %v181, 6
      %v229 = vpop.permute.xlu0 %228
      %238 = vrot.lane.b32.xlu0 %v174, 9
      %v239 = vpop.permute.xlu0 %238
      %240 = vrot.lane.b32.xlu0 %v175, 9
      %v241 = vpop.permute.xlu0 %240
      %242 = vrot.lane.b32.xlu0 %v176, 9
      %v243 = vpop.permute.xlu0 %242
      %244 = vrot.lane.b32.xlu0 %v177, 9
      %v245 = vpop.permute.xlu0 %244
      %246 = vrot.lane.b32.xlu0 %v178, 9
      %v247 = vpop.permute.xlu0 %246
      %248 = vrot.lane.b32.xlu0 %v179, 9
      %v249 = vpop.permute.xlu0 %248
      %250 = vrot.lane.b32.xlu0 %v180, 9
      %v251 = vpop.permute.xlu0 %250
      %252 = vrot.lane.b32.xlu0 %v181, 9
      %v253 = vpop.permute.xlu0 %252
      %262 = vrot.lane.b32.xlu0 %v174, 12
      %v263 = vpop.permute.xlu0 %262
      %264 = vrot.lane.b32.xlu0 %v175, 12
      %v265 = vpop.permute.xlu0 %264
      %266 = vrot.lane.b32.xlu0 %v176, 12
      %v267 = vpop.permute.xlu0 %266
      %268 = vrot.lane.b32.xlu0 %v177, 12
      %v269 = vpop.permute.xlu0 %268
      %270 = vrot.lane.b32.xlu0 %v178, 12
      %v271 = vpop.permute.xlu0 %270
      %272 = vrot.lane.b32.xlu0 %v179, 12
      %v273 = vpop.permute.xlu0 %272
      %274 = vrot.lane.b32.xlu0 %v180, 12
      %v275 = vpop.permute.xlu0 %274
      %276 = vrot.lane.b32.xlu0 %v181, 12
      %v277 = vpop.permute.xlu0 %276
      %286 = vrot.lane.b32.xlu0 %v174, 15
      %v287 = vpop.permute.xlu0 %286
      %288 = vrot.lane.b32.xlu0 %v175, 15
      %v289 = vpop.permute.xlu0 %288
      %290 = vrot.lane.b32.xlu0 %v176, 15
      %v291 = vpop.permute.xlu0 %290
      %292 = vrot.lane.b32.xlu0 %v177, 15
      %v293 = vpop.permute.xlu0 %292
      %294 = vrot.lane.b32.xlu0 %v178, 15
      %v295 = vpop.permute.xlu0 %294
      %296 = vrot.lane.b32.xlu0 %v179, 15
      %v297 = vpop.permute.xlu0 %296
      %298 = vrot.lane.b32.xlu0 %v180, 15
      %v299 = vpop.permute.xlu0 %298
      %300 = vrot.lane.b32.xlu0 %v181, 15
      %v301 = vpop.permute.xlu0 %300
      %310 = vrot.lane.b32.xlu0 %v174, 18
      %v311 = vpop.permute.xlu0 %310
      %312 = vrot.lane.b32.xlu0 %v175, 18
      %v313 = vpop.permute.xlu0 %312
      %314 = vrot.lane.b32.xlu0 %v176, 18
      %v315 = vpop.permute.xlu0 %314
      %316 = vrot.lane.b32.xlu0 %v177, 18
      %v317 = vpop.permute.xlu0 %316
      %318 = vrot.lane.b32.xlu0 %v178, 18
      %v319 = vpop.permute.xlu0 %318
      %320 = vrot.lane.b32.xlu0 %v179, 18
      %v321 = vpop.permute.xlu0 %320
      %322 = vrot.lane.b32.xlu0 %v180, 18
      %v323 = vpop.permute.xlu0 %322
      %324 = vrot.lane.b32.xlu0 %v181, 18
      %v325 = vpop.permute.xlu0 %324
      %334 = vrot.lane.b32.xlu0 %v174, 21
      %v335 = vpop.permute.xlu0 %334
      %336 = vrot.lane.b32.xlu0 %v175, 21
      %v337 = vpop.permute.xlu0 %336
      %338 = vrot.lane.b32.xlu0 %v176, 21
      %v339 = vpop.permute.xlu0 %338
      %340 = vrot.lane.b32.xlu0 %v177, 21
      %v341 = vpop.permute.xlu0 %340
      %342 = vrot.lane.b32.xlu0 %v178, 21
      %v343 = vpop.permute.xlu0 %342
      %344 = vrot.lane.b32.xlu0 %v179, 21
      %v345 = vpop.permute.xlu0 %344
      %346 = vrot.lane.b32.xlu0 %v180, 21
      %v347 = vpop.permute.xlu0 %346
      %348 = vrot.lane.b32.xlu0 %v181, 21
      %v349 = vpop.permute.xlu0 %348
      %358 = vrot.lane.b32.xlu0 %v174, 24
      %v359 = vpop.permute.xlu0 %358
      %360 = vrot.lane.b32.xlu0 %v175, 24
      %v361 = vpop.permute.xlu0 %360
      %362 = vrot.lane.b32.xlu0 %v176, 24
      %v363 = vpop.permute.xlu0 %362
      %364 = vrot.lane.b32.xlu0 %v177, 24
      %v365 = vpop.permute.xlu0 %364
      %366 = vrot.lane.b32.xlu0 %v178, 24
      %v367 = vpop.permute.xlu0 %366
      %368 = vrot.lane.b32.xlu0 %v179, 24
      %v369 = vpop.permute.xlu0 %368
      %370 = vrot.lane.b32.xlu0 %v180, 24
      %v371 = vpop.permute.xlu0 %370
      %372 = vrot.lane.b32.xlu0 %v181, 24
      %v373 = vpop.permute.xlu0 %372
      %382 = vrot.lane.b32.xlu0 %v174, 27
      %v383 = vpop.permute.xlu0 %382
      %384 = vrot.lane.b32.xlu0 %v175, 27
      %v385 = vpop.permute.xlu0 %384
      %386 = vrot.lane.b32.xlu0 %v176, 27
      %v387 = vpop.permute.xlu0 %386
      %388 = vrot.lane.b32.xlu0 %v177, 27
      %v389 = vpop.permute.xlu0 %388
      %390 = vrot.lane.b32.xlu0 %v178, 27
      %v391 = vpop.permute.xlu0 %390
      %392 = vrot.lane.b32.xlu0 %v179, 27
      %v393 = vpop.permute.xlu0 %392
      %394 = vrot.lane.b32.xlu0 %v180, 27
      %v395 = vpop.permute.xlu0 %394
      %396 = vrot.lane.b32.xlu0 %v181, 27
      %v397 = vpop.permute.xlu0 %396
      %406 = vrot.lane.b32.xlu0 %v174, 30
      %v407 = vpop.permute.xlu0 %406
      %408 = vrot.lane.b32.xlu0 %v175, 30
      %v409 = vpop.permute.xlu0 %408
      %410 = vrot.lane.b32.xlu0 %v176, 30
      %v411 = vpop.permute.xlu0 %410
      %412 = vrot.lane.b32.xlu0 %v177, 30
      %v413 = vpop.permute.xlu0 %412
      %414 = vrot.lane.b32.xlu0 %v178, 30
      %v415 = vpop.permute.xlu0 %414
      %416 = vrot.lane.b32.xlu0 %v179, 30
      %v417 = vpop.permute.xlu0 %416
      %418 = vrot.lane.b32.xlu0 %v180, 30
      %v419 = vpop.permute.xlu0 %418
      %420 = vrot.lane.b32.xlu0 %v181, 30
      %v421 = vpop.permute.xlu0 %420
      %430 = vrot.lane.b32.xlu0 %v174, 33
      %v431 = vpop.permute.xlu0 %430
      %432 = vrot.lane.b32.xlu0 %v175, 33
      %v433 = vpop.permute.xlu0 %432
      %434 = vrot.lane.b32.xlu0 %v176, 33
      %v435 = vpop.permute.xlu0 %434
      %436 = vrot.lane.b32.xlu0 %v177, 33
      %v437 = vpop.permute.xlu0 %436
      %438 = vrot.lane.b32.xlu0 %v178, 33
      %v439 = vpop.permute.xlu0 %438
      %440 = vrot.lane.b32.xlu0 %v179, 33
      %v441 = vpop.permute.xlu0 %440
      %442 = vrot.lane.b32.xlu0 %v180, 33
      %v443 = vpop.permute.xlu0 %442
      %444 = vrot.lane.b32.xlu0 %v181, 33
      %v445 = vpop.permute.xlu0 %444
      %454 = vrot.lane.b32.xlu0 %v174, 36
      %v455 = vpop.permute.xlu0 %454
      %456 = vrot.lane.b32.xlu0 %v175, 36
      %v457 = vpop.permute.xlu0 %456
      %458 = vrot.lane.b32.xlu0 %v176, 36
      %v459 = vpop.permute.xlu0 %458
      %460 = vrot.lane.b32.xlu0 %v177, 36
      %v461 = vpop.permute.xlu0 %460
      %462 = vrot.lane.b32.xlu0 %v178, 36
      %v463 = vpop.permute.xlu0 %462
      %464 = vrot.lane.b32.xlu0 %v179, 36
      %v465 = vpop.permute.xlu0 %464
      %466 = vrot.lane.b32.xlu0 %v180, 36
      %v467 = vpop.permute.xlu0 %466
      %468 = vrot.lane.b32.xlu0 %v181, 36
      %v469 = vpop.permute.xlu0 %468
      %478 = vrot.lane.b32.xlu0 %v174, 39
      %v479 = vpop.permute.xlu0 %478
      %480 = vrot.lane.b32.xlu0 %v175, 39
      %v481 = vpop.permute.xlu0 %480
      %482 = vrot.lane.b32.xlu0 %v176, 39
      %v483 = vpop.permute.xlu0 %482
      %484 = vrot.lane.b32.xlu0 %v177, 39
      %v485 = vpop.permute.xlu0 %484
      %486 = vrot.lane.b32.xlu0 %v178, 39
      %v487 = vpop.permute.xlu0 %486
      %488 = vrot.lane.b32.xlu0 %v179, 39
      %v489 = vpop.permute.xlu0 %488
      %490 = vrot.lane.b32.xlu0 %v180, 39
      %v491 = vpop.permute.xlu0 %490
      %492 = vrot.lane.b32.xlu0 %v181, 39
      %v493 = vpop.permute.xlu0 %492
      %502 = vrot.lane.b32.xlu0 %v174, 42
      %v503 = vpop.permute.xlu0 %502
      %504 = vrot.lane.b32.xlu0 %v175, 42
      %v505 = vpop.permute.xlu0 %504
      %506 = vrot.lane.b32.xlu0 %v176, 42
      %v507 = vpop.permute.xlu0 %506
      %508 = vrot.lane.b32.xlu0 %v177, 42
      %v509 = vpop.permute.xlu0 %508
      %510 = vrot.lane.b32.xlu0 %v178, 42
      %v511 = vpop.permute.xlu0 %510
      %512 = vrot.lane.b32.xlu0 %v179, 42
      %v513 = vpop.permute.xlu0 %512
      %514 = vrot.lane.b32.xlu0 %v180, 42
      %v515 = vpop.permute.xlu0 %514
      %516 = vrot.lane.b32.xlu0 %v181, 42
      %v517 = vpop.permute.xlu0 %516
      %526 = vrot.lane.b32.xlu0 %v174, 45
      %v527 = vpop.permute.xlu0 %526
      %528 = vrot.lane.b32.xlu0 %v175, 45
      %v529 = vpop.permute.xlu0 %528
      %530 = vrot.lane.b32.xlu0 %v176, 45
      %v531 = vpop.permute.xlu0 %530
      %532 = vrot.lane.b32.xlu0 %v177, 45
      %v533 = vpop.permute.xlu0 %532
      %534 = vrot.lane.b32.xlu0 %v178, 45
      %v535 = vpop.permute.xlu0 %534
      %536 = vrot.lane.b32.xlu0 %v179, 45
      %v537 = vpop.permute.xlu0 %536
      %538 = vrot.lane.b32.xlu0 %v180, 45
      %v539 = vpop.permute.xlu0 %538
      %540 = vrot.lane.b32.xlu0 %v181, 45
      %v541 = vpop.permute.xlu0 %540
      %vm550 = vcmask 23552
      %v551 = vsel %vm550, %v174, %v191
      %v552 = vsel %vm550, %v175, %v193
      %v553 = vsel %vm550, %v176, %v195
      %v554 = vsel %vm550, %v177, %v197
      %v555 = vsel %vm550, %v178, %v199
      %v556 = vsel %vm550, %v179, %v201
      %v557 = vsel %vm550, %v180, %v203
      %v558 = vsel %vm550, %v181, %v205
      %vm559 = vcmask 48128
      %v560 = vsel %vm559, %v551, %v215
      %v561 = vsel %vm559, %v552, %v217
      %v562 = vsel %vm559, %v553, %v219
      %v563 = vsel %vm559, %v554, %v221
      %v564 = vsel %vm559, %v555, %v223
      %v565 = vsel %vm559, %v556, %v225
      %v566 = vsel %vm559, %v557, %v227
      %v567 = vsel %vm559, %v558, %v229
      %vm568 = vcmask 72704
      %v569 = vsel %vm568, %v560, %v239
      %v570 = vsel %vm568, %v561, %v241
      %v571 = vsel %vm568, %v562, %v243
      %v572 = vsel %vm568, %v563, %v245
      %v573 = vsel %vm568, %v564, %v247
      %v574 = vsel %vm568, %v565, %v249
      %v575 = vsel %vm568, %v566, %v251
      %v576 = vsel %vm568, %v567, %v253
      %vm577 = vcmask 97280
      %v578 = vsel %vm577, %v569, %v263
      %v579 = vsel %vm577, %v570, %v265
      %v580 = vsel %vm577, %v571, %v267
      %v581 = vsel %vm577, %v572, %v269
      %v582 = vsel %vm577, %v573, %v271
      %v583 = vsel %vm577, %v574, %v273
      %v584 = vsel %vm577, %v575, %v275
      %v585 = vsel %vm577, %v576, %v277
      %vm586 = vcmask 121856
      %v587 = vsel %vm586, %v578, %v287
      %v588 = vsel %vm586, %v579, %v289
      %v589 = vsel %vm586, %v580, %v291
      %v590 = vsel %vm586, %v581, %v293
      %v591 = vsel %vm586, %v582, %v295
      %v592 = vsel %vm586, %v583, %v297
      %v593 = vsel %vm586, %v584, %v299
      %v594 = vsel %vm586, %v585, %v301
      %vm595 = vcmask 146432
      %v596 = vsel %vm595, %v587, %v311
      %v597 = vsel %vm595, %v588, %v313
      %v598 = vsel %vm595, %v589, %v315
      %v599 = vsel %vm595, %v590, %v317
      %v600 = vsel %vm595, %v591, %v319
      %v601 = vsel %vm595, %v592, %v321
      %v602 = vsel %vm595, %v593, %v323
      %v603 = vsel %vm595, %v594, %v325
      %vm604 = vcmask 171008
      %v605 = vsel %vm604, %v596, %v335
      %v606 = vsel %vm604, %v597, %v337
      %v607 = vsel %vm604, %v598, %v339
      %v608 = vsel %vm604, %v599, %v341
      %v609 = vsel %vm604, %v600, %v343
      %v610 = vsel %vm604, %v601, %v345
      %v611 = vsel %vm604, %v602, %v347
      %v612 = vsel %vm604, %v603, %v349
      %vm613 = vcmask 195584
      %v614 = vsel %vm613, %v605, %v359
      %v615 = vsel %vm613, %v606, %v361
      %v616 = vsel %vm613, %v607, %v363
      %v617 = vsel %vm613, %v608, %v365
      %v618 = vsel %vm613, %v609, %v367
      %v619 = vsel %vm613, %v610, %v369
      %v620 = vsel %vm613, %v611, %v371
      %v621 = vsel %vm613, %v612, %v373
      %vm622 = vcmask 220160
      %v623 = vsel %vm622, %v614, %v383
      %v624 = vsel %vm622, %v615, %v385
      %v625 = vsel %vm622, %v616, %v387
      %v626 = vsel %vm622, %v617, %v389
      %v627 = vsel %vm622, %v618, %v391
      %v628 = vsel %vm622, %v619, %v393
      %v629 = vsel %vm622, %v620, %v395
      %v630 = vsel %vm622, %v621, %v397
      %vm631 = vcmask 244736
      %v632 = vsel %vm631, %v623, %v407
      %v633 = vsel %vm631, %v624, %v409
      %v634 = vsel %vm631, %v625, %v411
      %v635 = vsel %vm631, %v626, %v413
      %v636 = vsel %vm631, %v627, %v415
      %v637 = vsel %vm631, %v628, %v417
      %v638 = vsel %vm631, %v629, %v419
      %v639 = vsel %vm631, %v630, %v421
      %vm640 = vcmask 269312
      %v641 = vsel %vm640, %v632, %v431
      %v642 = vsel %vm640, %v633, %v433
      %v643 = vsel %vm640, %v634, %v435
      %v644 = vsel %vm640, %v635, %v437
      %v645 = vsel %vm640, %v636, %v439
      %v646 = vsel %vm640, %v637, %v441
      %v647 = vsel %vm640, %v638, %v443
      %v648 = vsel %vm640, %v639, %v445
      %vm649 = vcmask 293888
      %v650 = vsel %vm649, %v641, %v455
      %v651 = vsel %vm649, %v642, %v457
      %v652 = vsel %vm649, %v643, %v459
      %v653 = vsel %vm649, %v644, %v461
      %v654 = vsel %vm649, %v645, %v463
      %v655 = vsel %vm649, %v646, %v465
      %v656 = vsel %vm649, %v647, %v467
      %v657 = vsel %vm649, %v648, %v469
      %vm658 = vcmask 318464
      %v659 = vsel %vm658, %v650, %v479
      %v660 = vsel %vm658, %v651, %v481
      %v661 = vsel %vm658, %v652, %v483
      %v662 = vsel %vm658, %v653, %v485
      %v663 = vsel %vm658, %v654, %v487
      %v664 = vsel %vm658, %v655, %v489
      %v665 = vsel %vm658, %v656, %v491
      %v666 = vsel %vm658, %v657, %v493
      %vm667 = vcmask 343040
      %v668 = vsel %vm667, %v659, %v503
      %v669 = vsel %vm667, %v660, %v505
      %v670 = vsel %vm667, %v661, %v507
      %v671 = vsel %vm667, %v662, %v509
      %v672 = vsel %vm667, %v663, %v511
      %v673 = vsel %vm667, %v664, %v513
      %v674 = vsel %vm667, %v665, %v515
      %v675 = vsel %vm667, %v666, %v517
      %vm676 = vcmask 367616
      %v677 = vsel %vm676, %v668, %v527
      %v678 = vsel %vm676, %v669, %v529
      %v679 = vsel %vm676, %v670, %v531
      %v680 = vsel %vm676, %v671, %v533
      %v681 = vsel %vm676, %v672, %v535
      %v682 = vsel %vm676, %v673, %v537
      %v683 = vsel %vm676, %v674, %v539
      %v684 = vsel %vm676, %v675, %v541
      %693 = vrot.lane.b32.xlu0 %v578, 48
      %v694 = vpop.permute.xlu0 %693
      %695 = vrot.lane.b32.xlu0 %v579, 48
      %v696 = vpop.permute.xlu0 %695
      %697 = vrot.lane.b32.xlu0 %v580, 48
      %v698 = vpop.permute.xlu0 %697
      %699 = vrot.lane.b32.xlu0 %v581, 48
      %v700 = vpop.permute.xlu0 %699
      %701 = vrot.lane.b32.xlu0 %v582, 48
      %v702 = vpop.permute.xlu0 %701
      %703 = vrot.lane.b32.xlu0 %v583, 48
      %v704 = vpop.permute.xlu0 %703
      %705 = vrot.lane.b32.xlu0 %v584, 48
      %v706 = vpop.permute.xlu0 %705
      %707 = vrot.lane.b32.xlu0 %v585, 48
      %v708 = vpop.permute.xlu0 %707
      %vm717 = vcmask 392192
      %v718 = vsel %vm717, %v677, %v694
      %v719 = vsel %vm717, %v678, %v696
      %v720 = vsel %vm717, %v679, %v698
      %v721 = vsel %vm717, %v680, %v700
      %v722 = vsel %vm717, %v681, %v702
      %v723 = vsel %vm717, %v682, %v704
      %v724 = vsel %vm717, %v683, %v706
      %v725 = vsel %vm717, %v684, %v708
      %v726 = vld [vmem:[%s0] sm:$0x1]
      %v727 = vld [vmem:[%s1] sm:$0x1]
      %v729 = vlaneseq
      %v730 = vshrl.u32 %v729, 7
      %v731 = vsub.s32 0, %v730
      %v732 = vrot.slane %v726, %v731
      %v734 = vmul.f32 %v718, %v732
      %v735 = vmul.f32 %v719, %v732
      %v736 = vmul.f32 %v720, %v732
      %v737 = vmul.f32 %v721, %v732
      %v738 = vmul.f32 %v722, %v732
      %v739 = vmul.f32 %v723, %v732
      %v740 = vmul.f32 %v724, %v732
      %v741 = vmul.f32 %v725, %v732
      %v742 = vand.u32 2147483647, %v734
      %vm743 = vcmp.le.f32.partialorder %v742, 0.7853982
      %vm744 = vcmp.lt.s32.totalorder %v734, 0
      %v745 = vand.u32 %v734, 2139095040
      %v746 = vshrl.u32 %v745, 23
      %v747 = vsub.s32 %v746, 127
      %v748 = vand.u32 2147483647, %v734
      %v749 = vand.u32 %v748, 8388607
      %v750 = vor.u32 %v749, 8388608
      %v751 = vsub.s32 0, %v750
      %v752 = vadd.s32 %v747, 1
      %vm753 = vcmp.gt.s32.totalorder %v752, 0
      %v754 = vsel %vm753, %v752, 0
      %v755 = vshrl.u32 %v754, 5
      %v756 = vand.u32 %v754, 31
      %v757 = vsub.s32 32, %v756
      %v758 = vshrl.u32 683565275, %v757
      %v759 = vshll.u32 683565275, %v756
      %v760 = vshrl.u32 2475754826, %v757
      %v761 = vor.u32 %v759, %v760
      %v762 = vshll.u32 2475754826, %v756
      %v763 = vshrl.u32 2131351028, %v757
      %v764 = vor.u32 %v762, %v763
      %v765 = vshll.u32 2131351028, %v756
      %v766 = vshrl.u32 2102212464, %v757
      %v767 = vor.u32 %v765, %v766
      %v768 = vshll.u32 2102212464, %v756
      %v769 = vshrl.u32 920167782, %v757
      %v770 = vor.u32 %v768, %v769
      %v771 = vshll.u32 920167782, %v756
      %v772 = vshrl.u32 1326507024, %v757
      %v773 = vor.u32 %v771, %v772
      %vm774 = vcmp.lt.s32.totalorder %v755, 1
      %vm775 = vcmp.lt.s32.totalorder %v755, 2
      %vm776 = vcmp.lt.s32.totalorder %v755, 3
      %vm777 = vcmp.lt.s32.totalorder %v755, 4
      %v778 = vsel %vm774, %v758, %v761
      %v779 = vsel %vm777, %v767, 2102212464
      %v780 = vsel %vm776, %v764, %v779
      %v781 = vsel %vm775, %v778, %v780
      %v782 = vsel %vm774, %v761, %v764
      %v783 = vsel %vm777, %v770, 920167782
      %v784 = vsel %vm776, %v767, %v783
      %v785 = vsel %vm775, %v782, %v784
      %v786 = vsel %vm774, %v764, %v767
      %v787 = vsel %vm777, %v773, 1326507024
      %v788 = vsel %vm776, %v770, %v787
      %v789 = vsel %vm775, %v786, %v788
      %v790 = vshll.u32 %v750, 8
      %v791 = vmul.u32.u64.compose %v790, %v789
      %v792 = vextract.low.u32 %v791
      %v793 = vextract.high.u32 %v791
      %v794 = vmul.u32.u64.compose %v790, %v785
      %v795 = vextract.low.u32 %v794
      %v796 = vextract.high.u32 %v794
      %v797 = vmul.u32 %v790, %v781
      %v798 = vadd.s32 %v793, %v795
      %vm799 = vc.u32 %v793, %v795
      %v800 = vadd.s32 %v796, 1
      %v801 = vsel %vm799, %v800, %v796
      %v802 = vadd.s32 %v797, %v801
      %v803 = vadd.s32 %v802, 536870912
      %v804 = vshrl.u32 %v803, 30
      %v805 = vshll.u32 %v804, 30
      %v806 = vsub.s32 %v802, %v805
      %vm807 = vcmp.lt.s32.totalorder %v806, 0
      %v808 = vsub.s32 0, %v806
      %v809 = vsel %vm807, %v808, %v806
      %v810 = vclz %v809
      %v811 = vsub.s32 %v810, 2
      %vm812 = vcmp.gt.s32.totalorder 0, %v811
      %v813 = vsel %vm812, 0, %v811
      %v814 = vsub.s32 32, %v813
      %v815 = vshll.u32 %v806, %v813
      %v816 = vshrl.u32 %v798, %v814
      %v817 = vor.u32 %v815, %v816
      %v818 = vsub.s32 4294967266, %v813
      %v819 = vadd.s32 %v818, 127
      %v820 = vshll.u32 %v819, 23
      %v821 = vor.u32 4788187, %v820
      %v822 = vand.u32 2147483647, %v821
      %v824 = vcvt.s32.f32 %v817
      %v825 = vmul.f32 %v824, %v822
      %v826 = vxor.u32 %v825, 2147483648
      %v827 = vsel %vm744, %v826, %v825
      %v828 = vsub.s32 4, %v804
      %v829 = vsel %vm744, %v828, %v804
      %v830 = vsel %vm743, %v734, %v827
      %v831 = vsel %vm743, 0, %v829
      %v832 = vcosq.f32.pop %v830
      %v833 = vsinq.f32.pop %v830
      %vm834 = vweird.f32 %v734
      %v835 = vadd.s32 %v831, 3
      %v836 = vand.u32 %v835, 3
      %vm837 = vcmp.lt.s32.totalorder %v836, 2
      %vm838 = vcmp.eq.s32.totalorder %v836, 0
      %v839 = vxor.u32 %v833, 2147483648
      %v840 = vsel %vm838, %v832, %v839
      %vm841 = vcmp.eq.s32.totalorder %v836, 2
      %v842 = vxor.u32 %v832, 2147483648
      %v843 = vsel %vm841, %v842, %v833
      %v844 = vsel %vm837, %v840, %v843
      %v845 = vsel %vm834, nan, %v844
      %v846 = vand.u32 2147483647, %v735
      %vm847 = vcmp.le.f32.partialorder %v846, 0.7853982
      %vm848 = vcmp.lt.s32.totalorder %v735, 0
      %v849 = vand.u32 %v735, 2139095040
      %v850 = vshrl.u32 %v849, 23
      %v851 = vsub.s32 %v850, 127
      %v852 = vand.u32 2147483647, %v735
      %v853 = vand.u32 %v852, 8388607
      %v854 = vor.u32 %v853, 8388608
      %v855 = vsub.s32 0, %v854
      %v856 = vadd.s32 %v851, 1
      %vm857 = vcmp.gt.s32.totalorder %v856, 0
      %v858 = vsel %vm857, %v856, 0
      %v859 = vshrl.u32 %v858, 5
      %v860 = vand.u32 %v858, 31
      %v861 = vsub.s32 32, %v860
      %v862 = vshrl.u32 683565275, %v861
      %v863 = vshll.u32 683565275, %v860
      %v864 = vshrl.u32 2475754826, %v861
      %v865 = vor.u32 %v863, %v864
      %v866 = vshll.u32 2475754826, %v860
      %v867 = vshrl.u32 2131351028, %v861
      %v868 = vor.u32 %v866, %v867
      %v869 = vshll.u32 2131351028, %v860
      %v870 = vshrl.u32 2102212464, %v861
      %v871 = vor.u32 %v869, %v870
      %v872 = vshll.u32 2102212464, %v860
      %v873 = vshrl.u32 920167782, %v861
      %v874 = vor.u32 %v872, %v873
      %v875 = vshll.u32 920167782, %v860
      %v876 = vshrl.u32 1326507024, %v861
      %v877 = vor.u32 %v875, %v876
      %vm878 = vcmp.lt.s32.totalorder %v859, 1
      %vm879 = vcmp.lt.s32.totalorder %v859, 2
      %vm880 = vcmp.lt.s32.totalorder %v859, 3
      %vm881 = vcmp.lt.s32.totalorder %v859, 4
      %v882 = vsel %vm878, %v862, %v865
      %v883 = vsel %vm881, %v871, 2102212464
      %v884 = vsel %vm880, %v868, %v883
      %v885 = vsel %vm879, %v882, %v884
      %v886 = vsel %vm878, %v865, %v868
      %v887 = vsel %vm881, %v874, 920167782
      %v888 = vsel %vm880, %v871, %v887
      %v889 = vsel %vm879, %v886, %v888
      %v890 = vsel %vm878, %v868, %v871
      %v891 = vsel %vm881, %v877, 1326507024
      %v892 = vsel %vm880, %v874, %v891
      %v893 = vsel %vm879, %v890, %v892
      %v894 = vshll.u32 %v854, 8
      %v895 = vmul.u32.u64.compose %v894, %v893
      %v896 = vextract.low.u32 %v895
      %v897 = vextract.high.u32 %v895
      %v898 = vmul.u32.u64.compose %v894, %v889
      %v899 = vextract.low.u32 %v898
      %v900 = vextract.high.u32 %v898
      %v901 = vmul.u32 %v894, %v885
      %v902 = vadd.s32 %v897, %v899
      %vm903 = vc.u32 %v897, %v899
      %v904 = vadd.s32 %v900, 1
      %v905 = vsel %vm903, %v904, %v900
      %v906 = vadd.s32 %v901, %v905
      %v907 = vadd.s32 %v906, 536870912
      %v908 = vshrl.u32 %v907, 30
      %v909 = vshll.u32 %v908, 30
      %v910 = vsub.s32 %v906, %v909
      %vm911 = vcmp.lt.s32.totalorder %v910, 0
      %v912 = vsub.s32 0, %v910
      %v913 = vsel %vm911, %v912, %v910
      %v914 = vclz %v913
      %v915 = vsub.s32 %v914, 2
      %vm916 = vcmp.gt.s32.totalorder 0, %v915
      %v917 = vsel %vm916, 0, %v915
      %v918 = vsub.s32 32, %v917
      %v919 = vshll.u32 %v910, %v917
      %v920 = vshrl.u32 %v902, %v918
      %v921 = vor.u32 %v919, %v920
      %v922 = vsub.s32 4294967266, %v917
      %v923 = vadd.s32 %v922, 127
      %v924 = vshll.u32 %v923, 23
      %v925 = vor.u32 4788187, %v924
      %v926 = vand.u32 2147483647, %v925
      %v928 = vcvt.s32.f32 %v921
      %v929 = vmul.f32 %v928, %v926
      %v930 = vxor.u32 %v929, 2147483648
      %v931 = vsel %vm848, %v930, %v929
      %v932 = vsub.s32 4, %v908
      %v933 = vsel %vm848, %v932, %v908
      %v934 = vsel %vm847, %v735, %v931
      %v935 = vsel %vm847, 0, %v933
      %v936 = vcosq.f32.pop %v934
      %v937 = vsinq.f32.pop %v934
      %vm938 = vweird.f32 %v735
      %v939 = vadd.s32 %v935, 3
      %v940 = vand.u32 %v939, 3
      %vm941 = vcmp.lt.s32.totalorder %v940, 2
      %vm942 = vcmp.eq.s32.totalorder %v940, 0
      %v943 = vxor.u32 %v937, 2147483648
      %v944 = vsel %vm942, %v936, %v943
      %vm945 = vcmp.eq.s32.totalorder %v940, 2
      %v946 = vxor.u32 %v936, 2147483648
      %v947 = vsel %vm945, %v946, %v937
      %v948 = vsel %vm941, %v944, %v947
      %v949 = vsel %vm938, nan, %v948
      %v950 = vand.u32 2147483647, %v736
      %vm951 = vcmp.le.f32.partialorder %v950, 0.7853982
      %vm952 = vcmp.lt.s32.totalorder %v736, 0
      %v953 = vand.u32 %v736, 2139095040
      %v954 = vshrl.u32 %v953, 23
      %v955 = vsub.s32 %v954, 127
      %v956 = vand.u32 2147483647, %v736
      %v957 = vand.u32 %v956, 8388607
      %v958 = vor.u32 %v957, 8388608
      %v959 = vsub.s32 0, %v958
      %v960 = vadd.s32 %v955, 1
      %vm961 = vcmp.gt.s32.totalorder %v960, 0
      %v962 = vsel %vm961, %v960, 0
      %v963 = vshrl.u32 %v962, 5
      %v964 = vand.u32 %v962, 31
      %v965 = vsub.s32 32, %v964
      %v966 = vshrl.u32 683565275, %v965
      %v967 = vshll.u32 683565275, %v964
      %v968 = vshrl.u32 2475754826, %v965
      %v969 = vor.u32 %v967, %v968
      %v970 = vshll.u32 2475754826, %v964
      %v971 = vshrl.u32 2131351028, %v965
      %v972 = vor.u32 %v970, %v971
      %v973 = vshll.u32 2131351028, %v964
      %v974 = vshrl.u32 2102212464, %v965
      %v975 = vor.u32 %v973, %v974
      %v976 = vshll.u32 2102212464, %v964
      %v977 = vshrl.u32 920167782, %v965
      %v978 = vor.u32 %v976, %v977
      %v979 = vshll.u32 920167782, %v964
      %v980 = vshrl.u32 1326507024, %v965
      %v981 = vor.u32 %v979, %v980
      %vm982 = vcmp.lt.s32.totalorder %v963, 1
      %vm983 = vcmp.lt.s32.totalorder %v963, 2
      %vm984 = vcmp.lt.s32.totalorder %v963, 3
      %vm985 = vcmp.lt.s32.totalorder %v963, 4
      %v986 = vsel %vm982, %v966, %v969
      %v987 = vsel %vm985, %v975, 2102212464
      %v988 = vsel %vm984, %v972, %v987
      %v989 = vsel %vm983, %v986, %v988
      %v990 = vsel %vm982, %v969, %v972
      %v991 = vsel %vm985, %v978, 920167782
      %v992 = vsel %vm984, %v975, %v991
      %v993 = vsel %vm983, %v990, %v992
      %v994 = vsel %vm982, %v972, %v975
      %v995 = vsel %vm985, %v981, 1326507024
      %v996 = vsel %vm984, %v978, %v995
      %v997 = vsel %vm983, %v994, %v996
      %v998 = vshll.u32 %v958, 8
      %v999 = vmul.u32.u64.compose %v998, %v997
      %v1000 = vextract.low.u32 %v999
      %v1001 = vextract.high.u32 %v999
      %v1002 = vmul.u32.u64.compose %v998, %v993
      %v1003 = vextract.low.u32 %v1002
      %v1004 = vextract.high.u32 %v1002
      %v1005 = vmul.u32 %v998, %v989
      %v1006 = vadd.s32 %v1001, %v1003
      %vm1007 = vc.u32 %v1001, %v1003
      %v1008 = vadd.s32 %v1004, 1
      %v1009 = vsel %vm1007, %v1008, %v1004
      %v1010 = vadd.s32 %v1005, %v1009
      %v1011 = vadd.s32 %v1010, 536870912
      %v1012 = vshrl.u32 %v1011, 30
      %v1013 = vshll.u32 %v1012, 30
      %v1014 = vsub.s32 %v1010, %v1013
      %vm1015 = vcmp.lt.s32.totalorder %v1014, 0
      %v1016 = vsub.s32 0, %v1014
      %v1017 = vsel %vm1015, %v1016, %v1014
      %v1018 = vclz %v1017
      %v1019 = vsub.s32 %v1018, 2
      %vm1020 = vcmp.gt.s32.totalorder 0, %v1019
      %v1021 = vsel %vm1020, 0, %v1019
      %v1022 = vsub.s32 32, %v1021
      %v1023 = vshll.u32 %v1014, %v1021
      %v1024 = vshrl.u32 %v1006, %v1022
      %v1025 = vor.u32 %v1023, %v1024
      %v1026 = vsub.s32 4294967266, %v1021
      %v1027 = vadd.s32 %v1026, 127
      %v1028 = vshll.u32 %v1027, 23
      %v1029 = vor.u32 4788187, %v1028
      %v1030 = vand.u32 2147483647, %v1029
      %v1032 = vcvt.s32.f32 %v1025
      %v1033 = vmul.f32 %v1032, %v1030
      %v1034 = vxor.u32 %v1033, 2147483648
      %v1035 = vsel %vm952, %v1034, %v1033
      %v1036 = vsub.s32 4, %v1012
      %v1037 = vsel %vm952, %v1036, %v1012
      %v1038 = vsel %vm951, %v736, %v1035
      %v1039 = vsel %vm951, 0, %v1037
      %v1040 = vcosq.f32.pop %v1038
      %v1041 = vsinq.f32.pop %v1038
      %vm1042 = vweird.f32 %v736
      %v1043 = vadd.s32 %v1039, 3
      %v1044 = vand.u32 %v1043, 3
      %vm1045 = vcmp.lt.s32.totalorder %v1044, 2
      %vm1046 = vcmp.eq.s32.totalorder %v1044, 0
      %v1047 = vxor.u32 %v1041, 2147483648
      %v1048 = vsel %vm1046, %v1040, %v1047
      %vm1049 = vcmp.eq.s32.totalorder %v1044, 2
      %v1050 = vxor.u32 %v1040, 2147483648
      %v1051 = vsel %vm1049, %v1050, %v1041
      %v1052 = vsel %vm1045, %v1048, %v1051
      %v1053 = vsel %vm1042, nan, %v1052
      %v1054 = vand.u32 2147483647, %v737
      %vm1055 = vcmp.le.f32.partialorder %v1054, 0.7853982
      %vm1056 = vcmp.lt.s32.totalorder %v737, 0
      %v1057 = vand.u32 %v737, 2139095040
      %v1058 = vshrl.u32 %v1057, 23
      %v1059 = vsub.s32 %v1058, 127
      %v1060 = vand.u32 2147483647, %v737
      %v1061 = vand.u32 %v1060, 8388607
      %v1062 = vor.u32 %v1061, 8388608
      %v1063 = vsub.s32 0, %v1062
      %v1064 = vadd.s32 %v1059, 1
      %vm1065 = vcmp.gt.s32.totalorder %v1064, 0
      %v1066 = vsel %vm1065, %v1064, 0
      %v1067 = vshrl.u32 %v1066, 5
      %v1068 = vand.u32 %v1066, 31
      %v1069 = vsub.s32 32, %v1068
      %v1070 = vshrl.u32 683565275, %v1069
      %v1071 = vshll.u32 683565275, %v1068
      %v1072 = vshrl.u32 2475754826, %v1069
      %v1073 = vor.u32 %v1071, %v1072
      %v1074 = vshll.u32 2475754826, %v1068
      %v1075 = vshrl.u32 2131351028, %v1069
      %v1076 = vor.u32 %v1074, %v1075
      %v1077 = vshll.u32 2131351028, %v1068
      %v1078 = vshrl.u32 2102212464, %v1069
      %v1079 = vor.u32 %v1077, %v1078
      %v1080 = vshll.u32 2102212464, %v1068
      %v1081 = vshrl.u32 920167782, %v1069
      %v1082 = vor.u32 %v1080, %v1081
      %v1083 = vshll.u32 920167782, %v1068
      %v1084 = vshrl.u32 1326507024, %v1069
      %v1085 = vor.u32 %v1083, %v1084
      %vm1086 = vcmp.lt.s32.totalorder %v1067, 1
      %vm1087 = vcmp.lt.s32.totalorder %v1067, 2
      %vm1088 = vcmp.lt.s32.totalorder %v1067, 3
      %vm1089 = vcmp.lt.s32.totalorder %v1067, 4
      %v1090 = vsel %vm1086, %v1070, %v1073
      %v1091 = vsel %vm1089, %v1079, 2102212464
      %v1092 = vsel %vm1088, %v1076, %v1091
      %v1093 = vsel %vm1087, %v1090, %v1092
      %v1094 = vsel %vm1086, %v1073, %v1076
      %v1095 = vsel %vm1089, %v1082, 920167782
      %v1096 = vsel %vm1088, %v1079, %v1095
      %v1097 = vsel %vm1087, %v1094, %v1096
      %v1098 = vsel %vm1086, %v1076, %v1079
      %v1099 = vsel %vm1089, %v1085, 1326507024
      %v1100 = vsel %vm1088, %v1082, %v1099
      %v1101 = vsel %vm1087, %v1098, %v1100
      %v1102 = vshll.u32 %v1062, 8
      %v1103 = vmul.u32.u64.compose %v1102, %v1101
      %v1104 = vextract.low.u32 %v1103
      %v1105 = vextract.high.u32 %v1103
      %v1106 = vmul.u32.u64.compose %v1102, %v1097
      %v1107 = vextract.low.u32 %v1106
      %v1108 = vextract.high.u32 %v1106
      %v1109 = vmul.u32 %v1102, %v1093
      %v1110 = vadd.s32 %v1105, %v1107
      %vm1111 = vc.u32 %v1105, %v1107
      %v1112 = vadd.s32 %v1108, 1
      %v1113 = vsel %vm1111, %v1112, %v1108
      %v1114 = vadd.s32 %v1109, %v1113
      %v1115 = vadd.s32 %v1114, 536870912
      %v1116 = vshrl.u32 %v1115, 30
      %v1117 = vshll.u32 %v1116, 30
      %v1118 = vsub.s32 %v1114, %v1117
      %vm1119 = vcmp.lt.s32.totalorder %v1118, 0
      %v1120 = vsub.s32 0, %v1118
      %v1121 = vsel %vm1119, %v1120, %v1118
      %v1122 = vclz %v1121
      %v1123 = vsub.s32 %v1122, 2
      %vm1124 = vcmp.gt.s32.totalorder 0, %v1123
      %v1125 = vsel %vm1124, 0, %v1123
      %v1126 = vsub.s32 32, %v1125
      %v1127 = vshll.u32 %v1118, %v1125
      %v1128 = vshrl.u32 %v1110, %v1126
      %v1129 = vor.u32 %v1127, %v1128
      %v1130 = vsub.s32 4294967266, %v1125
      %v1131 = vadd.s32 %v1130, 127
      %v1132 = vshll.u32 %v1131, 23
      %v1133 = vor.u32 4788187, %v1132
      %v1134 = vand.u32 2147483647, %v1133
      %v1136 = vcvt.s32.f32 %v1129
      %v1137 = vmul.f32 %v1136, %v1134
      %v1138 = vxor.u32 %v1137, 2147483648
      %v1139 = vsel %vm1056, %v1138, %v1137
      %v1140 = vsub.s32 4, %v1116
      %v1141 = vsel %vm1056, %v1140, %v1116
      %v1142 = vsel %vm1055, %v737, %v1139
      %v1143 = vsel %vm1055, 0, %v1141
      %v1144 = vcosq.f32.pop %v1142
      %v1145 = vsinq.f32.pop %v1142
      %vm1146 = vweird.f32 %v737
      %v1147 = vadd.s32 %v1143, 3
      %v1148 = vand.u32 %v1147, 3
      %vm1149 = vcmp.lt.s32.totalorder %v1148, 2
      %vm1150 = vcmp.eq.s32.totalorder %v1148, 0
      %v1151 = vxor.u32 %v1145, 2147483648
      %v1152 = vsel %vm1150, %v1144, %v1151
      %vm1153 = vcmp.eq.s32.totalorder %v1148, 2
      %v1154 = vxor.u32 %v1144, 2147483648
      %v1155 = vsel %vm1153, %v1154, %v1145
      %v1156 = vsel %vm1149, %v1152, %v1155
      %v1157 = vsel %vm1146, nan, %v1156
      %v1158 = vand.u32 2147483647, %v738
      %vm1159 = vcmp.le.f32.partialorder %v1158, 0.7853982
      %vm1160 = vcmp.lt.s32.totalorder %v738, 0
      %v1161 = vand.u32 %v738, 2139095040
      %v1162 = vshrl.u32 %v1161, 23
      %v1163 = vsub.s32 %v1162, 127
      %v1164 = vand.u32 2147483647, %v738
      %v1165 = vand.u32 %v1164, 8388607
      %v1166 = vor.u32 %v1165, 8388608
      %v1167 = vsub.s32 0, %v1166
      %v1168 = vadd.s32 %v1163, 1
      %vm1169 = vcmp.gt.s32.totalorder %v1168, 0
      %v1170 = vsel %vm1169, %v1168, 0
      %v1171 = vshrl.u32 %v1170, 5
      %v1172 = vand.u32 %v1170, 31
      %v1173 = vsub.s32 32, %v1172
      %v1174 = vshrl.u32 683565275, %v1173
      %v1175 = vshll.u32 683565275, %v1172
      %v1176 = vshrl.u32 2475754826, %v1173
      %v1177 = vor.u32 %v1175, %v1176
      %v1178 = vshll.u32 2475754826, %v1172
      %v1179 = vshrl.u32 2131351028, %v1173
      %v1180 = vor.u32 %v1178, %v1179
      %v1181 = vshll.u32 2131351028, %v1172
      %v1182 = vshrl.u32 2102212464, %v1173
      %v1183 = vor.u32 %v1181, %v1182
      %v1184 = vshll.u32 2102212464, %v1172
      %v1185 = vshrl.u32 920167782, %v1173
      %v1186 = vor.u32 %v1184, %v1185
      %v1187 = vshll.u32 920167782, %v1172
      %v1188 = vshrl.u32 1326507024, %v1173
      %v1189 = vor.u32 %v1187, %v1188
      %vm1190 = vcmp.lt.s32.totalorder %v1171, 1
      %vm1191 = vcmp.lt.s32.totalorder %v1171, 2
      %vm1192 = vcmp.lt.s32.totalorder %v1171, 3
      %vm1193 = vcmp.lt.s32.totalorder %v1171, 4
      %v1194 = vsel %vm1190, %v1174, %v1177
      %v1195 = vsel %vm1193, %v1183, 2102212464
      %v1196 = vsel %vm1192, %v1180, %v1195
      %v1197 = vsel %vm1191, %v1194, %v1196
      %v1198 = vsel %vm1190, %v1177, %v1180
      %v1199 = vsel %vm1193, %v1186, 920167782
      %v1200 = vsel %vm1192, %v1183, %v1199
      %v1201 = vsel %vm1191, %v1198, %v1200
      %v1202 = vsel %vm1190, %v1180, %v1183
      %v1203 = vsel %vm1193, %v1189, 1326507024
      %v1204 = vsel %vm1192, %v1186, %v1203
      %v1205 = vsel %vm1191, %v1202, %v1204
      %v1206 = vshll.u32 %v1166, 8
      %v1207 = vmul.u32.u64.compose %v1206, %v1205
      %v1208 = vextract.low.u32 %v1207
      %v1209 = vextract.high.u32 %v1207
      %v1210 = vmul.u32.u64.compose %v1206, %v1201
      %v1211 = vextract.low.u32 %v1210
      %v1212 = vextract.high.u32 %v1210
      %v1213 = vmul.u32 %v1206, %v1197
      %v1214 = vadd.s32 %v1209, %v1211
      %vm1215 = vc.u32 %v1209, %v1211
      %v1216 = vadd.s32 %v1212, 1
      %v1217 = vsel %vm1215, %v1216, %v1212
      %v1218 = vadd.s32 %v1213, %v1217
      %v1219 = vadd.s32 %v1218, 536870912
      %v1220 = vshrl.u32 %v1219, 30
      %v1221 = vshll.u32 %v1220, 30
      %v1222 = vsub.s32 %v1218, %v1221
      %vm1223 = vcmp.lt.s32.totalorder %v1222, 0
      %v1224 = vsub.s32 0, %v1222
      %v1225 = vsel %vm1223, %v1224, %v1222
      %v1226 = vclz %v1225
      %v1227 = vsub.s32 %v1226, 2
      %vm1228 = vcmp.gt.s32.totalorder 0, %v1227
      %v1229 = vsel %vm1228, 0, %v1227
      %v1230 = vsub.s32 32, %v1229
      %v1231 = vshll.u32 %v1222, %v1229
      %v1232 = vshrl.u32 %v1214, %v1230
      %v1233 = vor.u32 %v1231, %v1232
      %v1234 = vsub.s32 4294967266, %v1229
      %v1235 = vadd.s32 %v1234, 127
      %v1236 = vshll.u32 %v1235, 23
      %v1237 = vor.u32 4788187, %v1236
      %v1238 = vand.u32 2147483647, %v1237
      %v1240 = vcvt.s32.f32 %v1233
      %v1241 = vmul.f32 %v1240, %v1238
      %v1242 = vxor.u32 %v1241, 2147483648
      %v1243 = vsel %vm1160, %v1242, %v1241
      %v1244 = vsub.s32 4, %v1220
      %v1245 = vsel %vm1160, %v1244, %v1220
      %v1246 = vsel %vm1159, %v738, %v1243
      %v1247 = vsel %vm1159, 0, %v1245
      %v1248 = vcosq.f32.pop %v1246
      %v1249 = vsinq.f32.pop %v1246
      %vm1250 = vweird.f32 %v738
      %v1251 = vadd.s32 %v1247, 3
      %v1252 = vand.u32 %v1251, 3
      %vm1253 = vcmp.lt.s32.totalorder %v1252, 2
      %vm1254 = vcmp.eq.s32.totalorder %v1252, 0
      %v1255 = vxor.u32 %v1249, 2147483648
      %v1256 = vsel %vm1254, %v1248, %v1255
      %vm1257 = vcmp.eq.s32.totalorder %v1252, 2
      %v1258 = vxor.u32 %v1248, 2147483648
      %v1259 = vsel %vm1257, %v1258, %v1249
      %v1260 = vsel %vm1253, %v1256, %v1259
      %v1261 = vsel %vm1250, nan, %v1260
      %v1262 = vand.u32 2147483647, %v739
      %vm1263 = vcmp.le.f32.partialorder %v1262, 0.7853982
      %vm1264 = vcmp.lt.s32.totalorder %v739, 0
      %v1265 = vand.u32 %v739, 2139095040
      %v1266 = vshrl.u32 %v1265, 23
      %v1267 = vsub.s32 %v1266, 127
      %v1268 = vand.u32 2147483647, %v739
      %v1269 = vand.u32 %v1268, 8388607
      %v1270 = vor.u32 %v1269, 8388608
      %v1271 = vsub.s32 0, %v1270
      %v1272 = vadd.s32 %v1267, 1
      %vm1273 = vcmp.gt.s32.totalorder %v1272, 0
      %v1274 = vsel %vm1273, %v1272, 0
      %v1275 = vshrl.u32 %v1274, 5
      %v1276 = vand.u32 %v1274, 31
      %v1277 = vsub.s32 32, %v1276
      %v1278 = vshrl.u32 683565275, %v1277
      %v1279 = vshll.u32 683565275, %v1276
      %v1280 = vshrl.u32 2475754826, %v1277
      %v1281 = vor.u32 %v1279, %v1280
      %v1282 = vshll.u32 2475754826, %v1276
      %v1283 = vshrl.u32 2131351028, %v1277
      %v1284 = vor.u32 %v1282, %v1283
      %v1285 = vshll.u32 2131351028, %v1276
      %v1286 = vshrl.u32 2102212464, %v1277
      %v1287 = vor.u32 %v1285, %v1286
      %v1288 = vshll.u32 2102212464, %v1276
      %v1289 = vshrl.u32 920167782, %v1277
      %v1290 = vor.u32 %v1288, %v1289
      %v1291 = vshll.u32 920167782, %v1276
      %v1292 = vshrl.u32 1326507024, %v1277
      %v1293 = vor.u32 %v1291, %v1292
      %vm1294 = vcmp.lt.s32.totalorder %v1275, 1
      %vm1295 = vcmp.lt.s32.totalorder %v1275, 2
      %vm1296 = vcmp.lt.s32.totalorder %v1275, 3
      %vm1297 = vcmp.lt.s32.totalorder %v1275, 4
      %v1298 = vsel %vm1294, %v1278, %v1281
      %v1299 = vsel %vm1297, %v1287, 2102212464
      %v1300 = vsel %vm1296, %v1284, %v1299
      %v1301 = vsel %vm1295, %v1298, %v1300
      %v1302 = vsel %vm1294, %v1281, %v1284
      %v1303 = vsel %vm1297, %v1290, 920167782
      %v1304 = vsel %vm1296, %v1287, %v1303
      %v1305 = vsel %vm1295, %v1302, %v1304
      %v1306 = vsel %vm1294, %v1284, %v1287
      %v1307 = vsel %vm1297, %v1293, 1326507024
      %v1308 = vsel %vm1296, %v1290, %v1307
      %v1309 = vsel %vm1295, %v1306, %v1308
      %v1310 = vshll.u32 %v1270, 8
      %v1311 = vmul.u32.u64.compose %v1310, %v1309
      %v1312 = vextract.low.u32 %v1311
      %v1313 = vextract.high.u32 %v1311
      %v1314 = vmul.u32.u64.compose %v1310, %v1305
      %v1315 = vextract.low.u32 %v1314
      %v1316 = vextract.high.u32 %v1314
      %v1317 = vmul.u32 %v1310, %v1301
      %v1318 = vadd.s32 %v1313, %v1315
      %vm1319 = vc.u32 %v1313, %v1315
      %v1320 = vadd.s32 %v1316, 1
      %v1321 = vsel %vm1319, %v1320, %v1316
      %v1322 = vadd.s32 %v1317, %v1321
      %v1323 = vadd.s32 %v1322, 536870912
      %v1324 = vshrl.u32 %v1323, 30
      %v1325 = vshll.u32 %v1324, 30
      %v1326 = vsub.s32 %v1322, %v1325
      %vm1327 = vcmp.lt.s32.totalorder %v1326, 0
      %v1328 = vsub.s32 0, %v1326
      %v1329 = vsel %vm1327, %v1328, %v1326
      %v1330 = vclz %v1329
      %v1331 = vsub.s32 %v1330, 2
      %vm1332 = vcmp.gt.s32.totalorder 0, %v1331
      %v1333 = vsel %vm1332, 0, %v1331
      %v1334 = vsub.s32 32, %v1333
      %v1335 = vshll.u32 %v1326, %v1333
      %v1336 = vshrl.u32 %v1318, %v1334
      %v1337 = vor.u32 %v1335, %v1336
      %v1338 = vsub.s32 4294967266, %v1333
      %v1339 = vadd.s32 %v1338, 127
      %v1340 = vshll.u32 %v1339, 23
      %v1341 = vor.u32 4788187, %v1340
      %v1342 = vand.u32 2147483647, %v1341
      %v1344 = vcvt.s32.f32 %v1337
      %v1345 = vmul.f32 %v1344, %v1342
      %v1346 = vxor.u32 %v1345, 2147483648
      %v1347 = vsel %vm1264, %v1346, %v1345
      %v1348 = vsub.s32 4, %v1324
      %v1349 = vsel %vm1264, %v1348, %v1324
      %v1350 = vsel %vm1263, %v739, %v1347
      %v1351 = vsel %vm1263, 0, %v1349
      %v1352 = vcosq.f32.pop %v1350
      %v1353 = vsinq.f32.pop %v1350
      %vm1354 = vweird.f32 %v739
      %v1355 = vadd.s32 %v1351, 3
      %v1356 = vand.u32 %v1355, 3
      %vm1357 = vcmp.lt.s32.totalorder %v1356, 2
      %vm1358 = vcmp.eq.s32.totalorder %v1356, 0
      %v1359 = vxor.u32 %v1353, 2147483648
      %v1360 = vsel %vm1358, %v1352, %v1359
      %vm1361 = vcmp.eq.s32.totalorder %v1356, 2
      %v1362 = vxor.u32 %v1352, 2147483648
      %v1363 = vsel %vm1361, %v1362, %v1353
      %v1364 = vsel %vm1357, %v1360, %v1363
      %v1365 = vsel %vm1354, nan, %v1364
      %v1366 = vand.u32 2147483647, %v740
      %vm1367 = vcmp.le.f32.partialorder %v1366, 0.7853982
      %vm1368 = vcmp.lt.s32.totalorder %v740, 0
      %v1369 = vand.u32 %v740, 2139095040
      %v1370 = vshrl.u32 %v1369, 23
      %v1371 = vsub.s32 %v1370, 127
      %v1372 = vand.u32 2147483647, %v740
      %v1373 = vand.u32 %v1372, 8388607
      %v1374 = vor.u32 %v1373, 8388608
      %v1375 = vsub.s32 0, %v1374
      %v1376 = vadd.s32 %v1371, 1
      %vm1377 = vcmp.gt.s32.totalorder %v1376, 0
      %v1378 = vsel %vm1377, %v1376, 0
      %v1379 = vshrl.u32 %v1378, 5
      %v1380 = vand.u32 %v1378, 31
      %v1381 = vsub.s32 32, %v1380
      %v1382 = vshrl.u32 683565275, %v1381
      %v1383 = vshll.u32 683565275, %v1380
      %v1384 = vshrl.u32 2475754826, %v1381
      %v1385 = vor.u32 %v1383, %v1384
      %v1386 = vshll.u32 2475754826, %v1380
      %v1387 = vshrl.u32 2131351028, %v1381
      %v1388 = vor.u32 %v1386, %v1387
      %v1389 = vshll.u32 2131351028, %v1380
      %v1390 = vshrl.u32 2102212464, %v1381
      %v1391 = vor.u32 %v1389, %v1390
      %v1392 = vshll.u32 2102212464, %v1380
      %v1393 = vshrl.u32 920167782, %v1381
      %v1394 = vor.u32 %v1392, %v1393
      %v1395 = vshll.u32 920167782, %v1380
      %v1396 = vshrl.u32 1326507024, %v1381
      %v1397 = vor.u32 %v1395, %v1396
      %vm1398 = vcmp.lt.s32.totalorder %v1379, 1
      %vm1399 = vcmp.lt.s32.totalorder %v1379, 2
      %vm1400 = vcmp.lt.s32.totalorder %v1379, 3
      %vm1401 = vcmp.lt.s32.totalorder %v1379, 4
      %v1402 = vsel %vm1398, %v1382, %v1385
      %v1403 = vsel %vm1401, %v1391, 2102212464
      %v1404 = vsel %vm1400, %v1388, %v1403
      %v1405 = vsel %vm1399, %v1402, %v1404
      %v1406 = vsel %vm1398, %v1385, %v1388
      %v1407 = vsel %vm1401, %v1394, 920167782
      %v1408 = vsel %vm1400, %v1391, %v1407
      %v1409 = vsel %vm1399, %v1406, %v1408
      %v1410 = vsel %vm1398, %v1388, %v1391
      %v1411 = vsel %vm1401, %v1397, 1326507024
      %v1412 = vsel %vm1400, %v1394, %v1411
      %v1413 = vsel %vm1399, %v1410, %v1412
      %v1414 = vshll.u32 %v1374, 8
      %v1415 = vmul.u32.u64.compose %v1414, %v1413
      %v1416 = vextract.low.u32 %v1415
      %v1417 = vextract.high.u32 %v1415
      %v1418 = vmul.u32.u64.compose %v1414, %v1409
      %v1419 = vextract.low.u32 %v1418
      %v1420 = vextract.high.u32 %v1418
      %v1421 = vmul.u32 %v1414, %v1405
      %v1422 = vadd.s32 %v1417, %v1419
      %vm1423 = vc.u32 %v1417, %v1419
      %v1424 = vadd.s32 %v1420, 1
      %v1425 = vsel %vm1423, %v1424, %v1420
      %v1426 = vadd.s32 %v1421, %v1425
      %v1427 = vadd.s32 %v1426, 536870912
      %v1428 = vshrl.u32 %v1427, 30
      %v1429 = vshll.u32 %v1428, 30
      %v1430 = vsub.s32 %v1426, %v1429
      %vm1431 = vcmp.lt.s32.totalorder %v1430, 0
      %v1432 = vsub.s32 0, %v1430
      %v1433 = vsel %vm1431, %v1432, %v1430
      %v1434 = vclz %v1433
      %v1435 = vsub.s32 %v1434, 2
      %vm1436 = vcmp.gt.s32.totalorder 0, %v1435
      %v1437 = vsel %vm1436, 0, %v1435
      %v1438 = vsub.s32 32, %v1437
      %v1439 = vshll.u32 %v1430, %v1437
      %v1440 = vshrl.u32 %v1422, %v1438
      %v1441 = vor.u32 %v1439, %v1440
      %v1442 = vsub.s32 4294967266, %v1437
      %v1443 = vadd.s32 %v1442, 127
      %v1444 = vshll.u32 %v1443, 23
      %v1445 = vor.u32 4788187, %v1444
      %v1446 = vand.u32 2147483647, %v1445
      %v1448 = vcvt.s32.f32 %v1441
      %v1449 = vmul.f32 %v1448, %v1446
      %v1450 = vxor.u32 %v1449, 2147483648
      %v1451 = vsel %vm1368, %v1450, %v1449
      %v1452 = vsub.s32 4, %v1428
      %v1453 = vsel %vm1368, %v1452, %v1428
      %v1454 = vsel %vm1367, %v740, %v1451
      %v1455 = vsel %vm1367, 0, %v1453
      %v1456 = vcosq.f32.pop %v1454
      %v1457 = vsinq.f32.pop %v1454
      %vm1458 = vweird.f32 %v740
      %v1459 = vadd.s32 %v1455, 3
      %v1460 = vand.u32 %v1459, 3
      %vm1461 = vcmp.lt.s32.totalorder %v1460, 2
      %vm1462 = vcmp.eq.s32.totalorder %v1460, 0
      %v1463 = vxor.u32 %v1457, 2147483648
      %v1464 = vsel %vm1462, %v1456, %v1463
      %vm1465 = vcmp.eq.s32.totalorder %v1460, 2
      %v1466 = vxor.u32 %v1456, 2147483648
      %v1467 = vsel %vm1465, %v1466, %v1457
      %v1468 = vsel %vm1461, %v1464, %v1467
      %v1469 = vsel %vm1458, nan, %v1468
      %v1470 = vand.u32 2147483647, %v741
      %vm1471 = vcmp.le.f32.partialorder %v1470, 0.7853982
      %vm1472 = vcmp.lt.s32.totalorder %v741, 0
      %v1473 = vand.u32 %v741, 2139095040
      %v1474 = vshrl.u32 %v1473, 23
      %v1475 = vsub.s32 %v1474, 127
      %v1476 = vand.u32 2147483647, %v741
      %v1477 = vand.u32 %v1476, 8388607
      %v1478 = vor.u32 %v1477, 8388608
      %v1479 = vsub.s32 0, %v1478
      %v1480 = vadd.s32 %v1475, 1
      %vm1481 = vcmp.gt.s32.totalorder %v1480, 0
      %v1482 = vsel %vm1481, %v1480, 0
      %v1483 = vshrl.u32 %v1482, 5
      %v1484 = vand.u32 %v1482, 31
      %v1485 = vsub.s32 32, %v1484
      %v1486 = vshrl.u32 683565275, %v1485
      %v1487 = vshll.u32 683565275, %v1484
      %v1488 = vshrl.u32 2475754826, %v1485
      %v1489 = vor.u32 %v1487, %v1488
      %v1490 = vshll.u32 2475754826, %v1484
      %v1491 = vshrl.u32 2131351028, %v1485
      %v1492 = vor.u32 %v1490, %v1491
      %v1493 = vshll.u32 2131351028, %v1484
      %v1494 = vshrl.u32 2102212464, %v1485
      %v1495 = vor.u32 %v1493, %v1494
      %v1496 = vshll.u32 2102212464, %v1484
      %v1497 = vshrl.u32 920167782, %v1485
      %v1498 = vor.u32 %v1496, %v1497
      %v1499 = vshll.u32 920167782, %v1484
      %v1500 = vshrl.u32 1326507024, %v1485
      %v1501 = vor.u32 %v1499, %v1500
      %vm1502 = vcmp.lt.s32.totalorder %v1483, 1
      %vm1503 = vcmp.lt.s32.totalorder %v1483, 2
      %vm1504 = vcmp.lt.s32.totalorder %v1483, 3
      %vm1505 = vcmp.lt.s32.totalorder %v1483, 4
      %v1506 = vsel %vm1502, %v1486, %v1489
      %v1507 = vsel %vm1505, %v1495, 2102212464
      %v1508 = vsel %vm1504, %v1492, %v1507
      %v1509 = vsel %vm1503, %v1506, %v1508
      %v1510 = vsel %vm1502, %v1489, %v1492
      %v1511 = vsel %vm1505, %v1498, 920167782
      %v1512 = vsel %vm1504, %v1495, %v1511
      %v1513 = vsel %vm1503, %v1510, %v1512
      %v1514 = vsel %vm1502, %v1492, %v1495
      %v1515 = vsel %vm1505, %v1501, 1326507024
      %v1516 = vsel %vm1504, %v1498, %v1515
      %v1517 = vsel %vm1503, %v1514, %v1516
      %v1518 = vshll.u32 %v1478, 8
      %v1519 = vmul.u32.u64.compose %v1518, %v1517
      %v1520 = vextract.low.u32 %v1519
      %v1521 = vextract.high.u32 %v1519
      %v1522 = vmul.u32.u64.compose %v1518, %v1513
      %v1523 = vextract.low.u32 %v1522
      %v1524 = vextract.high.u32 %v1522
      %v1525 = vmul.u32 %v1518, %v1509
      %v1526 = vadd.s32 %v1521, %v1523
      %vm1527 = vc.u32 %v1521, %v1523
      %v1528 = vadd.s32 %v1524, 1
      %v1529 = vsel %vm1527, %v1528, %v1524
      %v1530 = vadd.s32 %v1525, %v1529
      %v1531 = vadd.s32 %v1530, 536870912
      %v1532 = vshrl.u32 %v1531, 30
      %v1533 = vshll.u32 %v1532, 30
      %v1534 = vsub.s32 %v1530, %v1533
      %vm1535 = vcmp.lt.s32.totalorder %v1534, 0
      %v1536 = vsub.s32 0, %v1534
      %v1537 = vsel %vm1535, %v1536, %v1534
      %v1538 = vclz %v1537
      %v1539 = vsub.s32 %v1538, 2
      %vm1540 = vcmp.gt.s32.totalorder 0, %v1539
      %v1541 = vsel %vm1540, 0, %v1539
      %v1542 = vsub.s32 32, %v1541
      %v1543 = vshll.u32 %v1534, %v1541
      %v1544 = vshrl.u32 %v1526, %v1542
      %v1545 = vor.u32 %v1543, %v1544
      %v1546 = vsub.s32 4294967266, %v1541
      %v1547 = vadd.s32 %v1546, 127
      %v1548 = vshll.u32 %v1547, 23
      %v1549 = vor.u32 4788187, %v1548
      %v1550 = vand.u32 2147483647, %v1549
      %v1552 = vcvt.s32.f32 %v1545
      %v1553 = vmul.f32 %v1552, %v1550
      %v1554 = vxor.u32 %v1553, 2147483648
      %v1555 = vsel %vm1472, %v1554, %v1553
      %v1556 = vsub.s32 4, %v1532
      %v1557 = vsel %vm1472, %v1556, %v1532
      %v1558 = vsel %vm1471, %v741, %v1555
      %v1559 = vsel %vm1471, 0, %v1557
      %v1560 = vcosq.f32.pop %v1558
      %v1561 = vsinq.f32.pop %v1558
      %vm1562 = vweird.f32 %v741
      %v1563 = vadd.s32 %v1559, 3
      %v1564 = vand.u32 %v1563, 3
      %vm1565 = vcmp.lt.s32.totalorder %v1564, 2
      %vm1566 = vcmp.eq.s32.totalorder %v1564, 0
      %v1567 = vxor.u32 %v1561, 2147483648
      %v1568 = vsel %vm1566, %v1560, %v1567
      %vm1569 = vcmp.eq.s32.totalorder %v1564, 2
      %v1570 = vxor.u32 %v1560, 2147483648
      %v1571 = vsel %vm1569, %v1570, %v1561
      %v1572 = vsel %vm1565, %v1568, %v1571
      %v1573 = vsel %vm1562, nan, %v1572
      %v1574 = vand.u32 2147483647, %v734
      %vm1575 = vcmp.le.f32.partialorder %v1574, 0.7853982
      %vm1576 = vcmp.lt.s32.totalorder %v734, 0
      %v1577 = vand.u32 %v734, 2139095040
      %v1578 = vshrl.u32 %v1577, 23
      %v1579 = vsub.s32 %v1578, 127
      %v1580 = vand.u32 2147483647, %v734
      %v1581 = vand.u32 %v1580, 8388607
      %v1582 = vor.u32 %v1581, 8388608
      %v1583 = vsub.s32 0, %v1582
      %v1584 = vadd.s32 %v1579, 1
      %vm1585 = vcmp.gt.s32.totalorder %v1584, 0
      %v1586 = vsel %vm1585, %v1584, 0
      %v1587 = vshrl.u32 %v1586, 5
      %v1588 = vand.u32 %v1586, 31
      %v1589 = vsub.s32 32, %v1588
      %v1590 = vshrl.u32 683565275, %v1589
      %v1591 = vshll.u32 683565275, %v1588
      %v1592 = vshrl.u32 2475754826, %v1589
      %v1593 = vor.u32 %v1591, %v1592
      %v1594 = vshll.u32 2475754826, %v1588
      %v1595 = vshrl.u32 2131351028, %v1589
      %v1596 = vor.u32 %v1594, %v1595
      %v1597 = vshll.u32 2131351028, %v1588
      %v1598 = vshrl.u32 2102212464, %v1589
      %v1599 = vor.u32 %v1597, %v1598
      %v1600 = vshll.u32 2102212464, %v1588
      %v1601 = vshrl.u32 920167782, %v1589
      %v1602 = vor.u32 %v1600, %v1601
      %v1603 = vshll.u32 920167782, %v1588
      %v1604 = vshrl.u32 1326507024, %v1589
      %v1605 = vor.u32 %v1603, %v1604
      %vm1606 = vcmp.lt.s32.totalorder %v1587, 1
      %vm1607 = vcmp.lt.s32.totalorder %v1587, 2
      %vm1608 = vcmp.lt.s32.totalorder %v1587, 3
      %vm1609 = vcmp.lt.s32.totalorder %v1587, 4
      %v1610 = vsel %vm1606, %v1590, %v1593
      %v1611 = vsel %vm1609, %v1599, 2102212464
      %v1612 = vsel %vm1608, %v1596, %v1611
      %v1613 = vsel %vm1607, %v1610, %v1612
      %v1614 = vsel %vm1606, %v1593, %v1596
      %v1615 = vsel %vm1609, %v1602, 920167782
      %v1616 = vsel %vm1608, %v1599, %v1615
      %v1617 = vsel %vm1607, %v1614, %v1616
      %v1618 = vsel %vm1606, %v1596, %v1599
      %v1619 = vsel %vm1609, %v1605, 1326507024
      %v1620 = vsel %vm1608, %v1602, %v1619
      %v1621 = vsel %vm1607, %v1618, %v1620
      %v1622 = vshll.u32 %v1582, 8
      %v1623 = vmul.u32.u64.compose %v1622, %v1621
      %v1624 = vextract.low.u32 %v1623
      %v1625 = vextract.high.u32 %v1623
      %v1626 = vmul.u32.u64.compose %v1622, %v1617
      %v1627 = vextract.low.u32 %v1626
      %v1628 = vextract.high.u32 %v1626
      %v1629 = vmul.u32 %v1622, %v1613
      %v1630 = vadd.s32 %v1625, %v1627
      %vm1631 = vc.u32 %v1625, %v1627
      %v1632 = vadd.s32 %v1628, 1
      %v1633 = vsel %vm1631, %v1632, %v1628
      %v1634 = vadd.s32 %v1629, %v1633
      %v1635 = vadd.s32 %v1634, 536870912
      %v1636 = vshrl.u32 %v1635, 30
      %v1637 = vshll.u32 %v1636, 30
      %v1638 = vsub.s32 %v1634, %v1637
      %vm1639 = vcmp.lt.s32.totalorder %v1638, 0
      %v1640 = vsub.s32 0, %v1638
      %v1641 = vsel %vm1639, %v1640, %v1638
      %v1642 = vclz %v1641
      %v1643 = vsub.s32 %v1642, 2
      %vm1644 = vcmp.gt.s32.totalorder 0, %v1643
      %v1645 = vsel %vm1644, 0, %v1643
      %v1646 = vsub.s32 32, %v1645
      %v1647 = vshll.u32 %v1638, %v1645
      %v1648 = vshrl.u32 %v1630, %v1646
      %v1649 = vor.u32 %v1647, %v1648
      %v1650 = vsub.s32 4294967266, %v1645
      %v1651 = vadd.s32 %v1650, 127
      %v1652 = vshll.u32 %v1651, 23
      %v1653 = vor.u32 4788187, %v1652
      %v1654 = vand.u32 2147483647, %v1653
      %v1656 = vcvt.s32.f32 %v1649
      %v1657 = vmul.f32 %v1656, %v1654
      %v1658 = vxor.u32 %v1657, 2147483648
      %v1659 = vsel %vm1576, %v1658, %v1657
      %v1660 = vsub.s32 4, %v1636
      %v1661 = vsel %vm1576, %v1660, %v1636
      %v1662 = vsel %vm1575, %v734, %v1659
      %v1663 = vsel %vm1575, 0, %v1661
      %v1664 = vcosq.f32.pop %v1662
      %v1665 = vsinq.f32.pop %v1662
      %vm1666 = vweird.f32 %v734
      %v1667 = vand.u32 %v1663, 3
      %vm1668 = vcmp.lt.s32.totalorder %v1667, 2
      %vm1669 = vcmp.eq.s32.totalorder %v1667, 0
      %v1670 = vxor.u32 %v1665, 2147483648
      %v1671 = vsel %vm1669, %v1664, %v1670
      %vm1672 = vcmp.eq.s32.totalorder %v1667, 2
      %v1673 = vxor.u32 %v1664, 2147483648
      %v1674 = vsel %vm1672, %v1673, %v1665
      %v1675 = vsel %vm1668, %v1671, %v1674
      %v1676 = vsel %vm1666, nan, %v1675
      %v1677 = vand.u32 2147483647, %v735
      %vm1678 = vcmp.le.f32.partialorder %v1677, 0.7853982
      %vm1679 = vcmp.lt.s32.totalorder %v735, 0
      %v1680 = vand.u32 %v735, 2139095040
      %v1681 = vshrl.u32 %v1680, 23
      %v1682 = vsub.s32 %v1681, 127
      %v1683 = vand.u32 2147483647, %v735
      %v1684 = vand.u32 %v1683, 8388607
      %v1685 = vor.u32 %v1684, 8388608
      %v1686 = vsub.s32 0, %v1685
      %v1687 = vadd.s32 %v1682, 1
      %vm1688 = vcmp.gt.s32.totalorder %v1687, 0
      %v1689 = vsel %vm1688, %v1687, 0
      %v1690 = vshrl.u32 %v1689, 5
      %v1691 = vand.u32 %v1689, 31
      %v1692 = vsub.s32 32, %v1691
      %v1693 = vshrl.u32 683565275, %v1692
      %v1694 = vshll.u32 683565275, %v1691
      %v1695 = vshrl.u32 2475754826, %v1692
      %v1696 = vor.u32 %v1694, %v1695
      %v1697 = vshll.u32 2475754826, %v1691
      %v1698 = vshrl.u32 2131351028, %v1692
      %v1699 = vor.u32 %v1697, %v1698
      %v1700 = vshll.u32 2131351028, %v1691
      %v1701 = vshrl.u32 2102212464, %v1692
      %v1702 = vor.u32 %v1700, %v1701
      %v1703 = vshll.u32 2102212464, %v1691
      %v1704 = vshrl.u32 920167782, %v1692
      %v1705 = vor.u32 %v1703, %v1704
      %v1706 = vshll.u32 920167782, %v1691
      %v1707 = vshrl.u32 1326507024, %v1692
      %v1708 = vor.u32 %v1706, %v1707
      %vm1709 = vcmp.lt.s32.totalorder %v1690, 1
      %vm1710 = vcmp.lt.s32.totalorder %v1690, 2
      %vm1711 = vcmp.lt.s32.totalorder %v1690, 3
      %vm1712 = vcmp.lt.s32.totalorder %v1690, 4
      %v1713 = vsel %vm1709, %v1693, %v1696
      %v1714 = vsel %vm1712, %v1702, 2102212464
      %v1715 = vsel %vm1711, %v1699, %v1714
      %v1716 = vsel %vm1710, %v1713, %v1715
      %v1717 = vsel %vm1709, %v1696, %v1699
      %v1718 = vsel %vm1712, %v1705, 920167782
      %v1719 = vsel %vm1711, %v1702, %v1718
      %v1720 = vsel %vm1710, %v1717, %v1719
      %v1721 = vsel %vm1709, %v1699, %v1702
      %v1722 = vsel %vm1712, %v1708, 1326507024
      %v1723 = vsel %vm1711, %v1705, %v1722
      %v1724 = vsel %vm1710, %v1721, %v1723
      %v1725 = vshll.u32 %v1685, 8
      %v1726 = vmul.u32.u64.compose %v1725, %v1724
      %v1727 = vextract.low.u32 %v1726
      %v1728 = vextract.high.u32 %v1726
      %v1729 = vmul.u32.u64.compose %v1725, %v1720
      %v1730 = vextract.low.u32 %v1729
      %v1731 = vextract.high.u32 %v1729
      %v1732 = vmul.u32 %v1725, %v1716
      %v1733 = vadd.s32 %v1728, %v1730
      %vm1734 = vc.u32 %v1728, %v1730
      %v1735 = vadd.s32 %v1731, 1
      %v1736 = vsel %vm1734, %v1735, %v1731
      %v1737 = vadd.s32 %v1732, %v1736
      %v1738 = vadd.s32 %v1737, 536870912
      %v1739 = vshrl.u32 %v1738, 30
      %v1740 = vshll.u32 %v1739, 30
      %v1741 = vsub.s32 %v1737, %v1740
      %vm1742 = vcmp.lt.s32.totalorder %v1741, 0
      %v1743 = vsub.s32 0, %v1741
      %v1744 = vsel %vm1742, %v1743, %v1741
      %v1745 = vclz %v1744
      %v1746 = vsub.s32 %v1745, 2
      %vm1747 = vcmp.gt.s32.totalorder 0, %v1746
      %v1748 = vsel %vm1747, 0, %v1746
      %v1749 = vsub.s32 32, %v1748
      %v1750 = vshll.u32 %v1741, %v1748
      %v1751 = vshrl.u32 %v1733, %v1749
      %v1752 = vor.u32 %v1750, %v1751
      %v1753 = vsub.s32 4294967266, %v1748
      %v1754 = vadd.s32 %v1753, 127
      %v1755 = vshll.u32 %v1754, 23
      %v1756 = vor.u32 4788187, %v1755
      %v1757 = vand.u32 2147483647, %v1756
      %v1759 = vcvt.s32.f32 %v1752
      %v1760 = vmul.f32 %v1759, %v1757
      %v1761 = vxor.u32 %v1760, 2147483648
      %v1762 = vsel %vm1679, %v1761, %v1760
      %v1763 = vsub.s32 4, %v1739
      %v1764 = vsel %vm1679, %v1763, %v1739
      %v1765 = vsel %vm1678, %v735, %v1762
      %v1766 = vsel %vm1678, 0, %v1764
      %v1767 = vcosq.f32.pop %v1765
      %v1768 = vsinq.f32.pop %v1765
      %vm1769 = vweird.f32 %v735
      %v1770 = vand.u32 %v1766, 3
      %vm1771 = vcmp.lt.s32.totalorder %v1770, 2
      %vm1772 = vcmp.eq.s32.totalorder %v1770, 0
      %v1773 = vxor.u32 %v1768, 2147483648
      %v1774 = vsel %vm1772, %v1767, %v1773
      %vm1775 = vcmp.eq.s32.totalorder %v1770, 2
      %v1776 = vxor.u32 %v1767, 2147483648
      %v1777 = vsel %vm1775, %v1776, %v1768
      %v1778 = vsel %vm1771, %v1774, %v1777
      %v1779 = vsel %vm1769, nan, %v1778
      %v1780 = vand.u32 2147483647, %v736
      %vm1781 = vcmp.le.f32.partialorder %v1780, 0.7853982
      %vm1782 = vcmp.lt.s32.totalorder %v736, 0
      %v1783 = vand.u32 %v736, 2139095040
      %v1784 = vshrl.u32 %v1783, 23
      %v1785 = vsub.s32 %v1784, 127
      %v1786 = vand.u32 2147483647, %v736
      %v1787 = vand.u32 %v1786, 8388607
      %v1788 = vor.u32 %v1787, 8388608
      %v1789 = vsub.s32 0, %v1788
      %v1790 = vadd.s32 %v1785, 1
      %vm1791 = vcmp.gt.s32.totalorder %v1790, 0
      %v1792 = vsel %vm1791, %v1790, 0
      %v1793 = vshrl.u32 %v1792, 5
      %v1794 = vand.u32 %v1792, 31
      %v1795 = vsub.s32 32, %v1794
      %v1796 = vshrl.u32 683565275, %v1795
      %v1797 = vshll.u32 683565275, %v1794
      %v1798 = vshrl.u32 2475754826, %v1795
      %v1799 = vor.u32 %v1797, %v1798
      %v1800 = vshll.u32 2475754826, %v1794
      %v1801 = vshrl.u32 2131351028, %v1795
      %v1802 = vor.u32 %v1800, %v1801
      %v1803 = vshll.u32 2131351028, %v1794
      %v1804 = vshrl.u32 2102212464, %v1795
      %v1805 = vor.u32 %v1803, %v1804
      %v1806 = vshll.u32 2102212464, %v1794
      %v1807 = vshrl.u32 920167782, %v1795
      %v1808 = vor.u32 %v1806, %v1807
      %v1809 = vshll.u32 920167782, %v1794
      %v1810 = vshrl.u32 1326507024, %v1795
      %v1811 = vor.u32 %v1809, %v1810
      %vm1812 = vcmp.lt.s32.totalorder %v1793, 1
      %vm1813 = vcmp.lt.s32.totalorder %v1793, 2
      %vm1814 = vcmp.lt.s32.totalorder %v1793, 3
      %vm1815 = vcmp.lt.s32.totalorder %v1793, 4
      %v1816 = vsel %vm1812, %v1796, %v1799
      %v1817 = vsel %vm1815, %v1805, 2102212464
      %v1818 = vsel %vm1814, %v1802, %v1817
      %v1819 = vsel %vm1813, %v1816, %v1818
      %v1820 = vsel %vm1812, %v1799, %v1802
      %v1821 = vsel %vm1815, %v1808, 920167782
      %v1822 = vsel %vm1814, %v1805, %v1821
      %v1823 = vsel %vm1813, %v1820, %v1822
      %v1824 = vsel %vm1812, %v1802, %v1805
      %v1825 = vsel %vm1815, %v1811, 1326507024
      %v1826 = vsel %vm1814, %v1808, %v1825
      %v1827 = vsel %vm1813, %v1824, %v1826
      %v1828 = vshll.u32 %v1788, 8
      %v1829 = vmul.u32.u64.compose %v1828, %v1827
      %v1830 = vextract.low.u32 %v1829
      %v1831 = vextract.high.u32 %v1829
      %v1832 = vmul.u32.u64.compose %v1828, %v1823
      %v1833 = vextract.low.u32 %v1832
      %v1834 = vextract.high.u32 %v1832
      %v1835 = vmul.u32 %v1828, %v1819
      %v1836 = vadd.s32 %v1831, %v1833
      %vm1837 = vc.u32 %v1831, %v1833
      %v1838 = vadd.s32 %v1834, 1
      %v1839 = vsel %vm1837, %v1838, %v1834
      %v1840 = vadd.s32 %v1835, %v1839
      %v1841 = vadd.s32 %v1840, 536870912
      %v1842 = vshrl.u32 %v1841, 30
      %v1843 = vshll.u32 %v1842, 30
      %v1844 = vsub.s32 %v1840, %v1843
      %vm1845 = vcmp.lt.s32.totalorder %v1844, 0
      %v1846 = vsub.s32 0, %v1844
      %v1847 = vsel %vm1845, %v1846, %v1844
      %v1848 = vclz %v1847
      %v1849 = vsub.s32 %v1848, 2
      %vm1850 = vcmp.gt.s32.totalorder 0, %v1849
      %v1851 = vsel %vm1850, 0, %v1849
      %v1852 = vsub.s32 32, %v1851
      %v1853 = vshll.u32 %v1844, %v1851
      %v1854 = vshrl.u32 %v1836, %v1852
      %v1855 = vor.u32 %v1853, %v1854
      %v1856 = vsub.s32 4294967266, %v1851
      %v1857 = vadd.s32 %v1856, 127
      %v1858 = vshll.u32 %v1857, 23
      %v1859 = vor.u32 4788187, %v1858
      %v1860 = vand.u32 2147483647, %v1859
      %v1862 = vcvt.s32.f32 %v1855
      %v1863 = vmul.f32 %v1862, %v1860
      %v1864 = vxor.u32 %v1863, 2147483648
      %v1865 = vsel %vm1782, %v1864, %v1863
      %v1866 = vsub.s32 4, %v1842
      %v1867 = vsel %vm1782, %v1866, %v1842
      %v1868 = vsel %vm1781, %v736, %v1865
      %v1869 = vsel %vm1781, 0, %v1867
      %v1870 = vcosq.f32.pop %v1868
      %v1871 = vsinq.f32.pop %v1868
      %vm1872 = vweird.f32 %v736
      %v1873 = vand.u32 %v1869, 3
      %vm1874 = vcmp.lt.s32.totalorder %v1873, 2
      %vm1875 = vcmp.eq.s32.totalorder %v1873, 0
      %v1876 = vxor.u32 %v1871, 2147483648
      %v1877 = vsel %vm1875, %v1870, %v1876
      %vm1878 = vcmp.eq.s32.totalorder %v1873, 2
      %v1879 = vxor.u32 %v1870, 2147483648
      %v1880 = vsel %vm1878, %v1879, %v1871
      %v1881 = vsel %vm1874, %v1877, %v1880
      %v1882 = vsel %vm1872, nan, %v1881
      %v1883 = vand.u32 2147483647, %v737
      %vm1884 = vcmp.le.f32.partialorder %v1883, 0.7853982
      %vm1885 = vcmp.lt.s32.totalorder %v737, 0
      %v1886 = vand.u32 %v737, 2139095040
      %v1887 = vshrl.u32 %v1886, 23
      %v1888 = vsub.s32 %v1887, 127
      %v1889 = vand.u32 2147483647, %v737
      %v1890 = vand.u32 %v1889, 8388607
      %v1891 = vor.u32 %v1890, 8388608
      %v1892 = vsub.s32 0, %v1891
      %v1893 = vadd.s32 %v1888, 1
      %vm1894 = vcmp.gt.s32.totalorder %v1893, 0
      %v1895 = vsel %vm1894, %v1893, 0
      %v1896 = vshrl.u32 %v1895, 5
      %v1897 = vand.u32 %v1895, 31
      %v1898 = vsub.s32 32, %v1897
      %v1899 = vshrl.u32 683565275, %v1898
      %v1900 = vshll.u32 683565275, %v1897
      %v1901 = vshrl.u32 2475754826, %v1898
      %v1902 = vor.u32 %v1900, %v1901
      %v1903 = vshll.u32 2475754826, %v1897
      %v1904 = vshrl.u32 2131351028, %v1898
      %v1905 = vor.u32 %v1903, %v1904
      %v1906 = vshll.u32 2131351028, %v1897
      %v1907 = vshrl.u32 2102212464, %v1898
      %v1908 = vor.u32 %v1906, %v1907
      %v1909 = vshll.u32 2102212464, %v1897
      %v1910 = vshrl.u32 920167782, %v1898
      %v1911 = vor.u32 %v1909, %v1910
      %v1912 = vshll.u32 920167782, %v1897
      %v1913 = vshrl.u32 1326507024, %v1898
      %v1914 = vor.u32 %v1912, %v1913
      %vm1915 = vcmp.lt.s32.totalorder %v1896, 1
      %vm1916 = vcmp.lt.s32.totalorder %v1896, 2
      %vm1917 = vcmp.lt.s32.totalorder %v1896, 3
      %vm1918 = vcmp.lt.s32.totalorder %v1896, 4
      %v1919 = vsel %vm1915, %v1899, %v1902
      %v1920 = vsel %vm1918, %v1908, 2102212464
      %v1921 = vsel %vm1917, %v1905, %v1920
      %v1922 = vsel %vm1916, %v1919, %v1921
      %v1923 = vsel %vm1915, %v1902, %v1905
      %v1924 = vsel %vm1918, %v1911, 920167782
      %v1925 = vsel %vm1917, %v1908, %v1924
      %v1926 = vsel %vm1916, %v1923, %v1925
      %v1927 = vsel %vm1915, %v1905, %v1908
      %v1928 = vsel %vm1918, %v1914, 1326507024
      %v1929 = vsel %vm1917, %v1911, %v1928
      %v1930 = vsel %vm1916, %v1927, %v1929
      %v1931 = vshll.u32 %v1891, 8
      %v1932 = vmul.u32.u64.compose %v1931, %v1930
      %v1933 = vextract.low.u32 %v1932
      %v1934 = vextract.high.u32 %v1932
      %v1935 = vmul.u32.u64.compose %v1931, %v1926
      %v1936 = vextract.low.u32 %v1935
      %v1937 = vextract.high.u32 %v1935
      %v1938 = vmul.u32 %v1931, %v1922
      %v1939 = vadd.s32 %v1934, %v1936
      %vm1940 = vc.u32 %v1934, %v1936
      %v1941 = vadd.s32 %v1937, 1
      %v1942 = vsel %vm1940, %v1941, %v1937
      %v1943 = vadd.s32 %v1938, %v1942
      %v1944 = vadd.s32 %v1943, 536870912
      %v1945 = vshrl.u32 %v1944, 30
      %v1946 = vshll.u32 %v1945, 30
      %v1947 = vsub.s32 %v1943, %v1946
      %vm1948 = vcmp.lt.s32.totalorder %v1947, 0
      %v1949 = vsub.s32 0, %v1947
      %v1950 = vsel %vm1948, %v1949, %v1947
      %v1951 = vclz %v1950
      %v1952 = vsub.s32 %v1951, 2
      %vm1953 = vcmp.gt.s32.totalorder 0, %v1952
      %v1954 = vsel %vm1953, 0, %v1952
      %v1955 = vsub.s32 32, %v1954
      %v1956 = vshll.u32 %v1947, %v1954
      %v1957 = vshrl.u32 %v1939, %v1955
      %v1958 = vor.u32 %v1956, %v1957
      %v1959 = vsub.s32 4294967266, %v1954
      %v1960 = vadd.s32 %v1959, 127
      %v1961 = vshll.u32 %v1960, 23
      %v1962 = vor.u32 4788187, %v1961
      %v1963 = vand.u32 2147483647, %v1962
      %v1965 = vcvt.s32.f32 %v1958
      %v1966 = vmul.f32 %v1965, %v1963
      %v1967 = vxor.u32 %v1966, 2147483648
      %v1968 = vsel %vm1885, %v1967, %v1966
      %v1969 = vsub.s32 4, %v1945
      %v1970 = vsel %vm1885, %v1969, %v1945
      %v1971 = vsel %vm1884, %v737, %v1968
      %v1972 = vsel %vm1884, 0, %v1970
      %v1973 = vcosq.f32.pop %v1971
      %v1974 = vsinq.f32.pop %v1971
      %vm1975 = vweird.f32 %v737
      %v1976 = vand.u32 %v1972, 3
      %vm1977 = vcmp.lt.s32.totalorder %v1976, 2
      %vm1978 = vcmp.eq.s32.totalorder %v1976, 0
      %v1979 = vxor.u32 %v1974, 2147483648
      %v1980 = vsel %vm1978, %v1973, %v1979
      %vm1981 = vcmp.eq.s32.totalorder %v1976, 2
      %v1982 = vxor.u32 %v1973, 2147483648
      %v1983 = vsel %vm1981, %v1982, %v1974
      %v1984 = vsel %vm1977, %v1980, %v1983
      %v1985 = vsel %vm1975, nan, %v1984
      %v1986 = vand.u32 2147483647, %v738
      %vm1987 = vcmp.le.f32.partialorder %v1986, 0.7853982
      %vm1988 = vcmp.lt.s32.totalorder %v738, 0
      %v1989 = vand.u32 %v738, 2139095040
      %v1990 = vshrl.u32 %v1989, 23
      %v1991 = vsub.s32 %v1990, 127
      %v1992 = vand.u32 2147483647, %v738
      %v1993 = vand.u32 %v1992, 8388607
      %v1994 = vor.u32 %v1993, 8388608
      %v1995 = vsub.s32 0, %v1994
      %v1996 = vadd.s32 %v1991, 1
      %vm1997 = vcmp.gt.s32.totalorder %v1996, 0
      %v1998 = vsel %vm1997, %v1996, 0
      %v1999 = vshrl.u32 %v1998, 5
      %v2000 = vand.u32 %v1998, 31
      %v2001 = vsub.s32 32, %v2000
      %v2002 = vshrl.u32 683565275, %v2001
      %v2003 = vshll.u32 683565275, %v2000
      %v2004 = vshrl.u32 2475754826, %v2001
      %v2005 = vor.u32 %v2003, %v2004
      %v2006 = vshll.u32 2475754826, %v2000
      %v2007 = vshrl.u32 2131351028, %v2001
      %v2008 = vor.u32 %v2006, %v2007
      %v2009 = vshll.u32 2131351028, %v2000
      %v2010 = vshrl.u32 2102212464, %v2001
      %v2011 = vor.u32 %v2009, %v2010
      %v2012 = vshll.u32 2102212464, %v2000
      %v2013 = vshrl.u32 920167782, %v2001
      %v2014 = vor.u32 %v2012, %v2013
      %v2015 = vshll.u32 920167782, %v2000
      %v2016 = vshrl.u32 1326507024, %v2001
      %v2017 = vor.u32 %v2015, %v2016
      %vm2018 = vcmp.lt.s32.totalorder %v1999, 1
      %vm2019 = vcmp.lt.s32.totalorder %v1999, 2
      %vm2020 = vcmp.lt.s32.totalorder %v1999, 3
      %vm2021 = vcmp.lt.s32.totalorder %v1999, 4
      %v2022 = vsel %vm2018, %v2002, %v2005
      %v2023 = vsel %vm2021, %v2011, 2102212464
      %v2024 = vsel %vm2020, %v2008, %v2023
      %v2025 = vsel %vm2019, %v2022, %v2024
      %v2026 = vsel %vm2018, %v2005, %v2008
      %v2027 = vsel %vm2021, %v2014, 920167782
      %v2028 = vsel %vm2020, %v2011, %v2027
      %v2029 = vsel %vm2019, %v2026, %v2028
      %v2030 = vsel %vm2018, %v2008, %v2011
      %v2031 = vsel %vm2021, %v2017, 1326507024
      %v2032 = vsel %vm2020, %v2014, %v2031
      %v2033 = vsel %vm2019, %v2030, %v2032
      %v2034 = vshll.u32 %v1994, 8
      %v2035 = vmul.u32.u64.compose %v2034, %v2033
      %v2036 = vextract.low.u32 %v2035
      %v2037 = vextract.high.u32 %v2035
      %v2038 = vmul.u32.u64.compose %v2034, %v2029
      %v2039 = vextract.low.u32 %v2038
      %v2040 = vextract.high.u32 %v2038
      %v2041 = vmul.u32 %v2034, %v2025
      %v2042 = vadd.s32 %v2037, %v2039
      %vm2043 = vc.u32 %v2037, %v2039
      %v2044 = vadd.s32 %v2040, 1
      %v2045 = vsel %vm2043, %v2044, %v2040
      %v2046 = vadd.s32 %v2041, %v2045
      %v2047 = vadd.s32 %v2046, 536870912
      %v2048 = vshrl.u32 %v2047, 30
      %v2049 = vshll.u32 %v2048, 30
      %v2050 = vsub.s32 %v2046, %v2049
      %vm2051 = vcmp.lt.s32.totalorder %v2050, 0
      %v2052 = vsub.s32 0, %v2050
      %v2053 = vsel %vm2051, %v2052, %v2050
      %v2054 = vclz %v2053
      %v2055 = vsub.s32 %v2054, 2
      %vm2056 = vcmp.gt.s32.totalorder 0, %v2055
      %v2057 = vsel %vm2056, 0, %v2055
      %v2058 = vsub.s32 32, %v2057
      %v2059 = vshll.u32 %v2050, %v2057
      %v2060 = vshrl.u32 %v2042, %v2058
      %v2061 = vor.u32 %v2059, %v2060
      %v2062 = vsub.s32 4294967266, %v2057
      %v2063 = vadd.s32 %v2062, 127
      %v2064 = vshll.u32 %v2063, 23
      %v2065 = vor.u32 4788187, %v2064
      %v2066 = vand.u32 2147483647, %v2065
      %v2068 = vcvt.s32.f32 %v2061
      %v2069 = vmul.f32 %v2068, %v2066
      %v2070 = vxor.u32 %v2069, 2147483648
      %v2071 = vsel %vm1988, %v2070, %v2069
      %v2072 = vsub.s32 4, %v2048
      %v2073 = vsel %vm1988, %v2072, %v2048
      %v2074 = vsel %vm1987, %v738, %v2071
      %v2075 = vsel %vm1987, 0, %v2073
      %v2076 = vcosq.f32.pop %v2074
      %v2077 = vsinq.f32.pop %v2074
      %vm2078 = vweird.f32 %v738
      %v2079 = vand.u32 %v2075, 3
      %vm2080 = vcmp.lt.s32.totalorder %v2079, 2
      %vm2081 = vcmp.eq.s32.totalorder %v2079, 0
      %v2082 = vxor.u32 %v2077, 2147483648
      %v2083 = vsel %vm2081, %v2076, %v2082
      %vm2084 = vcmp.eq.s32.totalorder %v2079, 2
      %v2085 = vxor.u32 %v2076, 2147483648
      %v2086 = vsel %vm2084, %v2085, %v2077
      %v2087 = vsel %vm2080, %v2083, %v2086
      %v2088 = vsel %vm2078, nan, %v2087
      %v2089 = vand.u32 2147483647, %v739
      %vm2090 = vcmp.le.f32.partialorder %v2089, 0.7853982
      %vm2091 = vcmp.lt.s32.totalorder %v739, 0
      %v2092 = vand.u32 %v739, 2139095040
      %v2093 = vshrl.u32 %v2092, 23
      %v2094 = vsub.s32 %v2093, 127
      %v2095 = vand.u32 2147483647, %v739
      %v2096 = vand.u32 %v2095, 8388607
      %v2097 = vor.u32 %v2096, 8388608
      %v2098 = vsub.s32 0, %v2097
      %v2099 = vadd.s32 %v2094, 1
      %vm2100 = vcmp.gt.s32.totalorder %v2099, 0
      %v2101 = vsel %vm2100, %v2099, 0
      %v2102 = vshrl.u32 %v2101, 5
      %v2103 = vand.u32 %v2101, 31
      %v2104 = vsub.s32 32, %v2103
      %v2105 = vshrl.u32 683565275, %v2104
      %v2106 = vshll.u32 683565275, %v2103
      %v2107 = vshrl.u32 2475754826, %v2104
      %v2108 = vor.u32 %v2106, %v2107
      %v2109 = vshll.u32 2475754826, %v2103
      %v2110 = vshrl.u32 2131351028, %v2104
      %v2111 = vor.u32 %v2109, %v2110
      %v2112 = vshll.u32 2131351028, %v2103
      %v2113 = vshrl.u32 2102212464, %v2104
      %v2114 = vor.u32 %v2112, %v2113
      %v2115 = vshll.u32 2102212464, %v2103
      %v2116 = vshrl.u32 920167782, %v2104
      %v2117 = vor.u32 %v2115, %v2116
      %v2118 = vshll.u32 920167782, %v2103
      %v2119 = vshrl.u32 1326507024, %v2104
      %v2120 = vor.u32 %v2118, %v2119
      %vm2121 = vcmp.lt.s32.totalorder %v2102, 1
      %vm2122 = vcmp.lt.s32.totalorder %v2102, 2
      %vm2123 = vcmp.lt.s32.totalorder %v2102, 3
      %vm2124 = vcmp.lt.s32.totalorder %v2102, 4
      %v2125 = vsel %vm2121, %v2105, %v2108
      %v2126 = vsel %vm2124, %v2114, 2102212464
      %v2127 = vsel %vm2123, %v2111, %v2126
      %v2128 = vsel %vm2122, %v2125, %v2127
      %v2129 = vsel %vm2121, %v2108, %v2111
      %v2130 = vsel %vm2124, %v2117, 920167782
      %v2131 = vsel %vm2123, %v2114, %v2130
      %v2132 = vsel %vm2122, %v2129, %v2131
      %v2133 = vsel %vm2121, %v2111, %v2114
      %v2134 = vsel %vm2124, %v2120, 1326507024
      %v2135 = vsel %vm2123, %v2117, %v2134
      %v2136 = vsel %vm2122, %v2133, %v2135
      %v2137 = vshll.u32 %v2097, 8
      %v2138 = vmul.u32.u64.compose %v2137, %v2136
      %v2139 = vextract.low.u32 %v2138
      %v2140 = vextract.high.u32 %v2138
      %v2141 = vmul.u32.u64.compose %v2137, %v2132
      %v2142 = vextract.low.u32 %v2141
      %v2143 = vextract.high.u32 %v2141
      %v2144 = vmul.u32 %v2137, %v2128
      %v2145 = vadd.s32 %v2140, %v2142
      %vm2146 = vc.u32 %v2140, %v2142
      %v2147 = vadd.s32 %v2143, 1
      %v2148 = vsel %vm2146, %v2147, %v2143
      %v2149 = vadd.s32 %v2144, %v2148
      %v2150 = vadd.s32 %v2149, 536870912
      %v2151 = vshrl.u32 %v2150, 30
      %v2152 = vshll.u32 %v2151, 30
      %v2153 = vsub.s32 %v2149, %v2152
      %vm2154 = vcmp.lt.s32.totalorder %v2153, 0
      %v2155 = vsub.s32 0, %v2153
      %v2156 = vsel %vm2154, %v2155, %v2153
      %v2157 = vclz %v2156
      %v2158 = vsub.s32 %v2157, 2
      %vm2159 = vcmp.gt.s32.totalorder 0, %v2158
      %v2160 = vsel %vm2159, 0, %v2158
      %v2161 = vsub.s32 32, %v2160
      %v2162 = vshll.u32 %v2153, %v2160
      %v2163 = vshrl.u32 %v2145, %v2161
      %v2164 = vor.u32 %v2162, %v2163
      %v2165 = vsub.s32 4294967266, %v2160
      %v2166 = vadd.s32 %v2165, 127
      %v2167 = vshll.u32 %v2166, 23
      %v2168 = vor.u32 4788187, %v2167
      %v2169 = vand.u32 2147483647, %v2168
      %v2171 = vcvt.s32.f32 %v2164
      %v2172 = vmul.f32 %v2171, %v2169
      %v2173 = vxor.u32 %v2172, 2147483648
      %v2174 = vsel %vm2091, %v2173, %v2172
      %v2175 = vsub.s32 4, %v2151
      %v2176 = vsel %vm2091, %v2175, %v2151
      %v2177 = vsel %vm2090, %v739, %v2174
      %v2178 = vsel %vm2090, 0, %v2176
      %v2179 = vcosq.f32.pop %v2177
      %v2180 = vsinq.f32.pop %v2177
      %vm2181 = vweird.f32 %v739
      %v2182 = vand.u32 %v2178, 3
      %vm2183 = vcmp.lt.s32.totalorder %v2182, 2
      %vm2184 = vcmp.eq.s32.totalorder %v2182, 0
      %v2185 = vxor.u32 %v2180, 2147483648
      %v2186 = vsel %vm2184, %v2179, %v2185
      %vm2187 = vcmp.eq.s32.totalorder %v2182, 2
      %v2188 = vxor.u32 %v2179, 2147483648
      %v2189 = vsel %vm2187, %v2188, %v2180
      %v2190 = vsel %vm2183, %v2186, %v2189
      %v2191 = vsel %vm2181, nan, %v2190
      %v2192 = vand.u32 2147483647, %v740
      %vm2193 = vcmp.le.f32.partialorder %v2192, 0.7853982
      %vm2194 = vcmp.lt.s32.totalorder %v740, 0
      %v2195 = vand.u32 %v740, 2139095040
      %v2196 = vshrl.u32 %v2195, 23
      %v2197 = vsub.s32 %v2196, 127
      %v2198 = vand.u32 2147483647, %v740
      %v2199 = vand.u32 %v2198, 8388607
      %v2200 = vor.u32 %v2199, 8388608
      %v2201 = vsub.s32 0, %v2200
      %v2202 = vadd.s32 %v2197, 1
      %vm2203 = vcmp.gt.s32.totalorder %v2202, 0
      %v2204 = vsel %vm2203, %v2202, 0
      %v2205 = vshrl.u32 %v2204, 5
      %v2206 = vand.u32 %v2204, 31
      %v2207 = vsub.s32 32, %v2206
      %v2208 = vshrl.u32 683565275, %v2207
      %v2209 = vshll.u32 683565275, %v2206
      %v2210 = vshrl.u32 2475754826, %v2207
      %v2211 = vor.u32 %v2209, %v2210
      %v2212 = vshll.u32 2475754826, %v2206
      %v2213 = vshrl.u32 2131351028, %v2207
      %v2214 = vor.u32 %v2212, %v2213
      %v2215 = vshll.u32 2131351028, %v2206
      %v2216 = vshrl.u32 2102212464, %v2207
      %v2217 = vor.u32 %v2215, %v2216
      %v2218 = vshll.u32 2102212464, %v2206
      %v2219 = vshrl.u32 920167782, %v2207
      %v2220 = vor.u32 %v2218, %v2219
      %v2221 = vshll.u32 920167782, %v2206
      %v2222 = vshrl.u32 1326507024, %v2207
      %v2223 = vor.u32 %v2221, %v2222
      %vm2224 = vcmp.lt.s32.totalorder %v2205, 1
      %vm2225 = vcmp.lt.s32.totalorder %v2205, 2
      %vm2226 = vcmp.lt.s32.totalorder %v2205, 3
      %vm2227 = vcmp.lt.s32.totalorder %v2205, 4
      %v2228 = vsel %vm2224, %v2208, %v2211
      %v2229 = vsel %vm2227, %v2217, 2102212464
      %v2230 = vsel %vm2226, %v2214, %v2229
      %v2231 = vsel %vm2225, %v2228, %v2230
      %v2232 = vsel %vm2224, %v2211, %v2214
      %v2233 = vsel %vm2227, %v2220, 920167782
      %v2234 = vsel %vm2226, %v2217, %v2233
      %v2235 = vsel %vm2225, %v2232, %v2234
      %v2236 = vsel %vm2224, %v2214, %v2217
      %v2237 = vsel %vm2227, %v2223, 1326507024
      %v2238 = vsel %vm2226, %v2220, %v2237
      %v2239 = vsel %vm2225, %v2236, %v2238
      %v2240 = vshll.u32 %v2200, 8
      %v2241 = vmul.u32.u64.compose %v2240, %v2239
      %v2242 = vextract.low.u32 %v2241
      %v2243 = vextract.high.u32 %v2241
      %v2244 = vmul.u32.u64.compose %v2240, %v2235
      %v2245 = vextract.low.u32 %v2244
      %v2246 = vextract.high.u32 %v2244
      %v2247 = vmul.u32 %v2240, %v2231
      %v2248 = vadd.s32 %v2243, %v2245
      %vm2249 = vc.u32 %v2243, %v2245
      %v2250 = vadd.s32 %v2246, 1
      %v2251 = vsel %vm2249, %v2250, %v2246
      %v2252 = vadd.s32 %v2247, %v2251
      %v2253 = vadd.s32 %v2252, 536870912
      %v2254 = vshrl.u32 %v2253, 30
      %v2255 = vshll.u32 %v2254, 30
      %v2256 = vsub.s32 %v2252, %v2255
      %vm2257 = vcmp.lt.s32.totalorder %v2256, 0
      %v2258 = vsub.s32 0, %v2256
      %v2259 = vsel %vm2257, %v2258, %v2256
      %v2260 = vclz %v2259
      %v2261 = vsub.s32 %v2260, 2
      %vm2262 = vcmp.gt.s32.totalorder 0, %v2261
      %v2263 = vsel %vm2262, 0, %v2261
      %v2264 = vsub.s32 32, %v2263
      %v2265 = vshll.u32 %v2256, %v2263
      %v2266 = vshrl.u32 %v2248, %v2264
      %v2267 = vor.u32 %v2265, %v2266
      %v2268 = vsub.s32 4294967266, %v2263
      %v2269 = vadd.s32 %v2268, 127
      %v2270 = vshll.u32 %v2269, 23
      %v2271 = vor.u32 4788187, %v2270
      %v2272 = vand.u32 2147483647, %v2271
      %v2274 = vcvt.s32.f32 %v2267
      %v2275 = vmul.f32 %v2274, %v2272
      %v2276 = vxor.u32 %v2275, 2147483648
      %v2277 = vsel %vm2194, %v2276, %v2275
      %v2278 = vsub.s32 4, %v2254
      %v2279 = vsel %vm2194, %v2278, %v2254
      %v2280 = vsel %vm2193, %v740, %v2277
      %v2281 = vsel %vm2193, 0, %v2279
      %v2282 = vcosq.f32.pop %v2280
      %v2283 = vsinq.f32.pop %v2280
      %vm2284 = vweird.f32 %v740
      %v2285 = vand.u32 %v2281, 3
      %vm2286 = vcmp.lt.s32.totalorder %v2285, 2
      %vm2287 = vcmp.eq.s32.totalorder %v2285, 0
      %v2288 = vxor.u32 %v2283, 2147483648
      %v2289 = vsel %vm2287, %v2282, %v2288
      %vm2290 = vcmp.eq.s32.totalorder %v2285, 2
      %v2291 = vxor.u32 %v2282, 2147483648
      %v2292 = vsel %vm2290, %v2291, %v2283
      %v2293 = vsel %vm2286, %v2289, %v2292
      %v2294 = vsel %vm2284, nan, %v2293
      %v2295 = vand.u32 2147483647, %v741
      %vm2296 = vcmp.le.f32.partialorder %v2295, 0.7853982
      %vm2297 = vcmp.lt.s32.totalorder %v741, 0
      %v2298 = vand.u32 %v741, 2139095040
      %v2299 = vshrl.u32 %v2298, 23
      %v2300 = vsub.s32 %v2299, 127
      %v2301 = vand.u32 2147483647, %v741
      %v2302 = vand.u32 %v2301, 8388607
      %v2303 = vor.u32 %v2302, 8388608
      %v2304 = vsub.s32 0, %v2303
      %v2305 = vadd.s32 %v2300, 1
      %vm2306 = vcmp.gt.s32.totalorder %v2305, 0
      %v2307 = vsel %vm2306, %v2305, 0
      %v2308 = vshrl.u32 %v2307, 5
      %v2309 = vand.u32 %v2307, 31
      %v2310 = vsub.s32 32, %v2309
      %v2311 = vshrl.u32 683565275, %v2310
      %v2312 = vshll.u32 683565275, %v2309
      %v2313 = vshrl.u32 2475754826, %v2310
      %v2314 = vor.u32 %v2312, %v2313
      %v2315 = vshll.u32 2475754826, %v2309
      %v2316 = vshrl.u32 2131351028, %v2310
      %v2317 = vor.u32 %v2315, %v2316
      %v2318 = vshll.u32 2131351028, %v2309
      %v2319 = vshrl.u32 2102212464, %v2310
      %v2320 = vor.u32 %v2318, %v2319
      %v2321 = vshll.u32 2102212464, %v2309
      %v2322 = vshrl.u32 920167782, %v2310
      %v2323 = vor.u32 %v2321, %v2322
      %v2324 = vshll.u32 920167782, %v2309
      %v2325 = vshrl.u32 1326507024, %v2310
      %v2326 = vor.u32 %v2324, %v2325
      %vm2327 = vcmp.lt.s32.totalorder %v2308, 1
      %vm2328 = vcmp.lt.s32.totalorder %v2308, 2
      %vm2329 = vcmp.lt.s32.totalorder %v2308, 3
      %vm2330 = vcmp.lt.s32.totalorder %v2308, 4
      %v2331 = vsel %vm2327, %v2311, %v2314
      %v2332 = vsel %vm2330, %v2320, 2102212464
      %v2333 = vsel %vm2329, %v2317, %v2332
      %v2334 = vsel %vm2328, %v2331, %v2333
      %v2335 = vsel %vm2327, %v2314, %v2317
      %v2336 = vsel %vm2330, %v2323, 920167782
      %v2337 = vsel %vm2329, %v2320, %v2336
      %v2338 = vsel %vm2328, %v2335, %v2337
      %v2339 = vsel %vm2327, %v2317, %v2320
      %v2340 = vsel %vm2330, %v2326, 1326507024
      %v2341 = vsel %vm2329, %v2323, %v2340
      %v2342 = vsel %vm2328, %v2339, %v2341
      %v2343 = vshll.u32 %v2303, 8
      %v2344 = vmul.u32.u64.compose %v2343, %v2342
      %v2345 = vextract.low.u32 %v2344
      %v2346 = vextract.high.u32 %v2344
      %v2347 = vmul.u32.u64.compose %v2343, %v2338
      %v2348 = vextract.low.u32 %v2347
      %v2349 = vextract.high.u32 %v2347
      %v2350 = vmul.u32 %v2343, %v2334
      %v2351 = vadd.s32 %v2346, %v2348
      %vm2352 = vc.u32 %v2346, %v2348
      %v2353 = vadd.s32 %v2349, 1
      %v2354 = vsel %vm2352, %v2353, %v2349
      %v2355 = vadd.s32 %v2350, %v2354
      %v2356 = vadd.s32 %v2355, 536870912
      %v2357 = vshrl.u32 %v2356, 30
      %v2358 = vshll.u32 %v2357, 30
      %v2359 = vsub.s32 %v2355, %v2358
      %vm2360 = vcmp.lt.s32.totalorder %v2359, 0
      %v2361 = vsub.s32 0, %v2359
      %v2362 = vsel %vm2360, %v2361, %v2359
      %v2363 = vclz %v2362
      %v2364 = vsub.s32 %v2363, 2
      %vm2365 = vcmp.gt.s32.totalorder 0, %v2364
      %v2366 = vsel %vm2365, 0, %v2364
      %v2367 = vsub.s32 32, %v2366
      %v2368 = vshll.u32 %v2359, %v2366
      %v2369 = vshrl.u32 %v2351, %v2367
      %v2370 = vor.u32 %v2368, %v2369
      %v2371 = vsub.s32 4294967266, %v2366
      %v2372 = vadd.s32 %v2371, 127
      %v2373 = vshll.u32 %v2372, 23
      %v2374 = vor.u32 4788187, %v2373
      %v2375 = vand.u32 2147483647, %v2374
      %v2377 = vcvt.s32.f32 %v2370
      %v2378 = vmul.f32 %v2377, %v2375
      %v2379 = vxor.u32 %v2378, 2147483648
      %v2380 = vsel %vm2297, %v2379, %v2378
      %v2381 = vsub.s32 4, %v2357
      %v2382 = vsel %vm2297, %v2381, %v2357
      %v2383 = vsel %vm2296, %v741, %v2380
      %v2384 = vsel %vm2296, 0, %v2382
      %v2385 = vcosq.f32.pop %v2383
      %v2386 = vsinq.f32.pop %v2383
      %vm2387 = vweird.f32 %v741
      %v2388 = vand.u32 %v2384, 3
      %vm2389 = vcmp.lt.s32.totalorder %v2388, 2
      %vm2390 = vcmp.eq.s32.totalorder %v2388, 0
      %v2391 = vxor.u32 %v2386, 2147483648
      %v2392 = vsel %vm2390, %v2385, %v2391
      %vm2393 = vcmp.eq.s32.totalorder %v2388, 2
      %v2394 = vxor.u32 %v2385, 2147483648
      %v2395 = vsel %vm2393, %v2394, %v2386
      %v2396 = vsel %vm2389, %v2392, %v2395
      %v2397 = vsel %vm2387, nan, %v2396
      %vm2398 = vcmp.eq.s32.totalorder %v727, 0
      %v2399 = vsel %vm2398, 1, 0
      %v2400 = vlaneseq
      %v2401 = vshrl.u32 %v2400, 7
      %v2402 = vsub.s32 0, %v2401
      %v2403 = vrot.slane %v2399, %v2402
      %vm2404 = vcmp.eq.s32.totalorder %v2403, 1
      %vm2405 = vcmp.eq.s32.totalorder %v727, 1
      %v2406 = vsel %vm2405, 1, 0
      %v2407 = vlaneseq
      %v2408 = vshrl.u32 %v2407, 7
      %v2409 = vsub.s32 0, %v2408
      %v2410 = vrot.slane %v2406, %v2409
      %vm2411 = vcmp.eq.s32.totalorder %v2410, 1
      %v2412 = vsel %vm2411, %v845, %v1676
      %v2413 = vsel %vm2411, %v949, %v1779
      %v2414 = vsel %vm2411, %v1053, %v1882
      %v2415 = vsel %vm2411, %v1157, %v1985
      %v2416 = vsel %vm2411, %v1261, %v2088
      %v2417 = vsel %vm2411, %v1365, %v2191
      %v2418 = vsel %vm2411, %v1469, %v2294
      %v2419 = vsel %vm2411, %v1573, %v2397
      %v2420 = vsel %vm2404, %v718, %v2412
      %v2421 = vsel %vm2404, %v719, %v2413
      %v2422 = vsel %vm2404, %v720, %v2414
      %v2423 = vsel %vm2404, %v721, %v2415
      %v2424 = vsel %vm2404, %v722, %v2416
      %v2425 = vsel %vm2404, %v723, %v2417
      %v2426 = vsel %vm2404, %v724, %v2418
      %v2427 = vsel %vm2404, %v725, %v2419
      %vm2428 = vcmask 515072
      %2429 = vst.msk [vmem:[%s172] sm:$0xff] %vm2428, %v2420
      %2430 = vst.msk [vmem:[%s172 + $0x8] sm:$0xff] %vm2428, %v2421
      %2431 = vst.msk [vmem:[%s172 + $0x10] sm:$0xff] %vm2428, %v2422
      %2432 = vst.msk [vmem:[%s172 + $0x18] sm:$0xff] %vm2428, %v2423
      %2433 = vst.msk [vmem:[%s172 + $0x20] sm:$0xff] %vm2428, %v2424
      %2434 = vst.msk [vmem:[%s172 + $0x28] sm:$0xff] %vm2428, %v2425
      %2435 = vst.msk [vmem:[%s172 + $0x30] sm:$0xff] %vm2428, %v2426
      %2436 = vst.msk [vmem:[%s172 + $0x38] sm:$0xff] %vm2428, %v2427
      %s2437 = smul.u32 8, %s14
      %p2438 = scmp.lt.s32.totalorder %s2437, 31
      %s2439 = scalar_select %p2438, %s2437, 31
      %s2440 = smul.addr %s2439, 8
      %s2441 = scalar_lea.vmem %s3, %s2440
      // Predicated region
      $region33: #{tpu_custom_call.1} parent=31 // pred_check
        %p2442 = pneg %p100
      $region34: #{tpu_custom_call.1} parent=31 // pred_check_branch
        %2444 = sbr.rel (%p2442) target = $region36
      $region35: #{tpu_custom_call.1} parent=31 // pred_region
        %s2445 = smul.u32 8, %s14
      $region36: #{tpu_custom_call.1} parent=31 // pred_fallthru
        _
    $region32: #{tpu_custom_call.1} parent=5 // pred_fallthru
      _
    %p2446 = scmp.le.s32.totalorder 2, %s9
    // Predicated region
    $region37: #{tpu_custom_call.1} parent=5 // pred_check
      %p2447 = pneg %p2446
    $region38: #{tpu_custom_call.1} parent=5 // pred_check_branch
      %2449 = sbr.rel (%p2447) target = $region40
    $region39: #{tpu_custom_call.1} parent=5 // pred_region
      %s2450 = ssub.s32 %s9, 2
      // Predicated region
      $region41: #{tpu_custom_call.1} parent=39 // pred_check
        %p2451 = pneg %p106
      $region42: #{tpu_custom_call.1} parent=39 // pred_check_branch
        %2453 = sbr.rel (%p2451) target = $region44
      $region43: #{tpu_custom_call.1} parent=39 // pred_region
        %s2454 = smul.u32 8, %s15
        %p2455 = scmp.lt.s32.totalorder %s2454, 31
        %s2456 = scalar_select %p2455, %s2454, 31
        %s2457 = smul.addr %s2456, 8
        %s2458 = scalar_lea.vmem %s3, %s2457
      $region44: #{tpu_custom_call.1} parent=39 // pred_fallthru
        _
    $region40: #{tpu_custom_call.1} parent=5 // pred_fallthru
      _
  $region6: #{tpu_custom_call.1} parent=0 // loop_footer
    %s13 = sadd.s32 1, %s9
  $region7: #{tpu_custom_call.1} parent=0 // loop_footer_branch
    %8 = sbr.rel target = $region3
  $region8: #{tpu_custom_call.1} parent=0 // loop_exit
    _

</llo_original>
